<compile_context>
chip_gen: v7x
topology: tpu7x:2x2x1
jax: 0.10.0
libtpu: 0.0.40
codegen_flags: <defaults>
</compile_context>

<pallas_src>
import jax
import jax.numpy as jnp
from jax.experimental import pallas as pl
from jax.experimental.pallas import tpu as pltpu


def _linear_kernel(x_ref, w_ref, b_ref, o_ref):
    # x_ref: (B, Kp)   w_ref: (Kp, N) (pre-transposed weight)
    # b_ref: (1, N)    o_ref: (B, N)
    acc = jnp.dot(x_ref[...], w_ref[...], preferred_element_type=jnp.float32)
    o_ref[...] = (acc + b_ref[...]).astype(o_ref.dtype)


def prepare_linear_params(weight, bias):
    """One-time parameter prep (amortized to zero in steady state).

    weight: (out, in) PyTorch layout  ->  (Kp, out) with K zero-padded to a
    multiple of 128 so all weight vregs are full-lane.
    """
    N, K = weight.shape
    Kp = ((K + 127) // 128) * 128
    w_kn = weight.T                                   # (K, N) layout change, once
    if Kp != K:
        w_kn = jnp.pad(w_kn, ((0, Kp - K), (0, 0)))   # zero rows -> no effect on y
    return w_kn, bias.reshape(1, N)


def flatten_linear(x, w_kn, b2d):
    """x: (B, C, 1, 1) f32; w_kn: (Kp, N) f32 (prepared); b2d: (1, N) f32."""
    B = x.shape[0]
    Kp, N = w_kn.shape

    x2d = x.reshape(B, -1)                 # torch.flatten(x, 1)
    K = x2d.shape[1]
    if K != Kp:
        x2d = jnp.pad(x2d, ((0, 0), (0, Kp - K)))

    itemsize = jnp.dtype(x.dtype).itemsize
    bytes_accessed = (
        x2d.size * itemsize
        + w_kn.size * jnp.dtype(w_kn.dtype).itemsize
        + b2d.size * jnp.dtype(b2d.dtype).itemsize
        + B * N * itemsize
    )
    cost = pl.CostEstimate(
        flops=2 * B * Kp * N,
        transcendentals=0,
        bytes_accessed=bytes_accessed,
    )

    out = pl.pallas_call(
        _linear_kernel,
        out_shape=jax.ShapeDtypeStruct((B, N), x.dtype),
        grid=(1,),  # single step: no per-grid-step overhead on 1-TC chips
        in_specs=[
            pl.BlockSpec((B, Kp), lambda i: (0, 0)),   # activations (tiny)
            pl.BlockSpec((Kp, N), lambda i: (0, 0)),   # full weight, one DMA stream
            pl.BlockSpec((1, N), lambda i: (0, 0)),    # bias
        ],
        out_specs=pl.BlockSpec((B, N), lambda i: (0, 0)),
        compiler_params=pltpu.CompilerParams(
            dimension_semantics=("arbitrary",),
        ),
        cost_estimate=cost,
    )(x2d, w_kn, b2d)
    return out


if __name__ == "__main__":
    key = jax.random.PRNGKey(0)
    k_x, k_w, k_b = jax.random.split(key, 3)

    B, C, IN, OUT = 1, 576, 576, 1024

    # Module input: torch.randn([1, 576, 1, 1]) analogue.
    x = jax.random.normal(k_x, (B, C, 1, 1), dtype=jnp.float32)

    # Deterministic Linear(576, 1024) params (PyTorch layout: (out, in)).
    bound = 1.0 / (IN ** 0.5)
    weight = jax.random.uniform(
        k_w, (OUT, IN), minval=-bound, maxval=bound, dtype=jnp.float32
    )
    bias = jax.random.uniform(
        k_b, (OUT,), minval=-bound, maxval=bound, dtype=jnp.float32
    )

    # One-time parameter prep (transpose to (K, N) + pad K to 640).
    w_kn, b2d = prepare_linear_params(weight, bias)

    y = flatten_linear(x, w_kn, b2d)
    y = jax.block_until_ready(y)

    # Reference check against plain JAX.
    y_ref = x.reshape(B, C) @ weight.T + bias
    assert y.shape == (B, OUT)
    assert jnp.allclose(y, y_ref, atol=1e-4, rtol=1e-4)

    print("KERNEL_OK")
</pallas_src>

<mosaic_0001>
module attributes {stable_mosaic.version = 11 : i64} {
  func.func @_linear_kernel(%arg0: i32, %arg1: memref<1x640xf32, #tpu.memory_space<vmem>>, %arg2: memref<640x1024xf32, #tpu.memory_space<vmem>>, %arg3: memref<1x1024xf32, #tpu.memory_space<vmem>>, %arg4: memref<1x1024xf32, #tpu.memory_space<vmem>>) attributes {dimension_semantics = [#tpu.dimension_semantics<arbitrary>], iteration_bounds = array<i64: 1>, scalar_prefetch = 0 : i64, scratch_operands = 0 : i64, tpu.core_type = #tpu.core_type<tc>, window_params = [{pipeline_mode = #tpu.pipeline_mode<synchronous>, transform_indices = @transform_0, window_bounds = array<i64: 1, 640>}, {pipeline_mode = #tpu.pipeline_mode<synchronous>, transform_indices = @transform_1, window_bounds = array<i64: 640, 1024>}, {pipeline_mode = #tpu.pipeline_mode<synchronous>, transform_indices = @transform_2, window_bounds = array<i64: 1, 1024>}, {pipeline_mode = #tpu.pipeline_mode<synchronous>, transform_indices = @transform_3, window_bounds = array<i64: 1, 1024>}]} {
    %c0 = arith.constant 0 : index
    %c0_0 = arith.constant 0 : index
    %0 = vector.load %arg1[%c0, %c0_0] : memref<1x640xf32, #tpu.memory_space<vmem>>, vector<1x640xf32>
    %c0_1 = arith.constant 0 : index
    %c0_2 = arith.constant 0 : index
    %1 = vector.load %arg2[%c0_1, %c0_2] : memref<640x1024xf32, #tpu.memory_space<vmem>>, vector<640x1024xf32>
    %cst = arith.constant dense<0.000000e+00> : vector<1x1024xf32>
    %2 = tpu.matmul %0, %1, %cst {dimension_numbers = #tpu.dot_dimension_numbers<[1], [0], [0], [1], [0, 0, 1, 1], [], []>} : vector<1x640xf32>, vector<640x1024xf32>, vector<1x1024xf32> -> vector<1x1024xf32>
    %c0_3 = arith.constant 0 : index
    %c0_4 = arith.constant 0 : index
    %3 = vector.load %arg3[%c0_3, %c0_4] : memref<1x1024xf32, #tpu.memory_space<vmem>>, vector<1x1024xf32>
    %4 = arith.addf %2, %3 : vector<1x1024xf32>
    %c0_5 = arith.constant 0 : index
    %c0_6 = arith.constant 0 : index
    %5 = vector.load %arg4[%c0_5, %c0_6] : memref<1x1024xf32, #tpu.memory_space<vmem>>, vector<1x1024xf32>
    tpu.vector_store %arg4[%c0_5, %c0_6], %4 {strides = array<i32>} : memref<1x1024xf32, #tpu.memory_space<vmem>>, vector<1x1024xf32>,
    return
  }
  func.func @transform_0(%arg0: i32) -> (i32, i32) {
    %c0_i32 = arith.constant 0 : i32
    %c0_i32_0 = arith.constant 0 : i32
    %c0_i32_1 = arith.constant 0 : i32
    return %c0_i32, %c0_i32_0 : i32, i32
  }
  func.func @transform_1(%arg0: i32) -> (i32, i32) {
    %c0_i32 = arith.constant 0 : i32
    %c0_i32_0 = arith.constant 0 : i32
    %c0_i32_1 = arith.constant 0 : i32
    return %c0_i32, %c0_i32_0 : i32, i32
  }
  func.func @transform_2(%arg0: i32) -> (i32, i32) {
    %c0_i32 = arith.constant 0 : i32
    %c0_i32_0 = arith.constant 0 : i32
    %c0_i32_1 = arith.constant 0 : i32
    return %c0_i32, %c0_i32_0 : i32, i32
  }
  func.func @transform_3(%arg0: i32) -> (i32, i32) {
    %c0_i32 = arith.constant 0 : i32
    %c0_i32_0 = arith.constant 0 : i32
    %c0_i32_1 = arith.constant 0 : i32
    return %c0_i32, %c0_i32_0 : i32, i32
  }
}

</mosaic_0001>

<llo_original>
// kernel: tpu_custom_call.1
$region0: #{tpu_custom_call.1}
  #allocation0 [shape = 'u32[]', space=smem, size = 0x4, offset = 0x4, fixed_abs, tag = 'smem constant byte address 0x4 - core index']
  #allocation1 [shape = 'u32[144,128]{1,0:T(1,128)}', space=vmem, size = 0x12000, scoped, tag = 'internal scratch']
  %s0 = inlined_call_operand.hbm [shape: f32[1,640], index: 0, kind: input, shape index: {}]
  %s1 = inlined_call_operand.hbm [shape: f32[640,1024], index: 1, kind: input, shape index: {}]
  %s2 = inlined_call_operand.hbm [shape: f32[1,1024], index: 2, kind: input, shape index: {}]
  %s3 = inlined_call_operand.hbm [shape: f32[1,1024], index: 3, kind: output, shape index: {}]
  %s4 = sld [smem:[#allocation0]]
  $region34: #{tpu_custom_call.1} parent=0
    _
  %s6 = ssub.s32 1, %s4
  %s7 = scalar_select 0, %s6, %s4
  $region1: #{tpu_custom_call.1} parent=0
    #allocation2 [shape = 'u8[2560]{0}', space=vmem, size = 0xc00, scoped, tag = 'input window, operand 0, single buffered']
    #allocation3 [shape = 's32[1]{0}', space=sflag, size = 0x4, scoped, tag = 'scoped memory for tpu_custom_call.1']
    #allocation4 [shape = 's32[1]{0}', space=sflag, size = 0x4, scoped, tag = 'scoped memory for tpu_custom_call.1']
    #allocation5 [shape = 'u8[2621440]{0}', space=vmem, size = 0x280000, scoped, tag = 'input window, operand 1, single buffered']
    #allocation6 [shape = 's32[1]{0}', space=sflag, size = 0x4, scoped, tag = 'scoped memory for tpu_custom_call.1']
    #allocation7 [shape = 'u8[4096]{0}', space=vmem, size = 0x1000, scoped, tag = 'input window, operand 2, single buffered']
    #allocation8 [shape = 'u8[4096]{0}', space=vmem, size = 0x1000, scoped, tag = 'output window, operand 0, single buffered']
    %8 = vsyncpa [#allocation3], 0
    %9 = vsyncpa [#allocation6], 0
    %10 = vsyncpa [#allocation4], 0
    // Predicated region
    $region2: #{tpu_custom_call.1} parent=1 // pred_check
      _
    $region3: #{tpu_custom_call.1} parent=1 // pred_check_branch
      %12 = sbr.rel (0) target = $region5
    $region4: #{tpu_custom_call.1} parent=1 // pred_region
      %s14 = ssub.s32 80, 80
      %15 = vsyncadd [#allocation3], %s14
      %s17 = sshll.u32 [#allocation2], 4
      %s18 = int_to_ptr.vmem [resolvable:$true] %s17
      %20 = dma.hbm_to_vmem [thread:$0]  %s0, 80, %s18, [#allocation3]
    $region5: #{tpu_custom_call.1} parent=1 // pred_fallthru
      _
    // Predicated region
    $region6: #{tpu_custom_call.1} parent=1 // pred_check
      _
    $region7: #{tpu_custom_call.1} parent=1 // pred_check_branch
      %22 = sbr.rel (0) target = $region9
    $region8: #{tpu_custom_call.1} parent=1 // pred_region
      %s24 = ssub.s32 81920, 81920
      %25 = vsyncadd [#allocation6], %s24
      %s26 = sshll.u32 [#allocation5], 4
      %s27 = int_to_ptr.vmem [resolvable:$true] %s26
      %32 = dma.hbm_to_vmem [thread:$0]  %s1, 81920, %s27, [#allocation6], 1024, 1024, 64
    $region9: #{tpu_custom_call.1} parent=1 // pred_fallthru
      _
    // Predicated region
    $region10: #{tpu_custom_call.1} parent=1 // pred_check
      _
    $region11: #{tpu_custom_call.1} parent=1 // pred_check_branch
      %34 = sbr.rel (0) target = $region13
    $region12: #{tpu_custom_call.1} parent=1 // pred_region
      %s36 = ssub.s32 128, 128
      %37 = vsyncadd [#allocation6], %s36
      %s39 = sshll.u32 [#allocation7], 4
      %s40 = int_to_ptr.vmem [resolvable:$true] %s39
      %42 = dma.hbm_to_vmem [thread:$0]  %s2, 128, %s40, [#allocation6]
    $region13: #{tpu_custom_call.1} parent=1 // pred_fallthru
      _
    // Predicated region
    $region14: #{tpu_custom_call.1} parent=1 // pred_check
      _
    $region15: #{tpu_custom_call.1} parent=1 // pred_check_branch
      %44 = sbr.rel (0) target = $region17
    $region16: #{tpu_custom_call.1} parent=1 // pred_region
      %45 = dma.done [#allocation3], 80
    $region17: #{tpu_custom_call.1} parent=1 // pred_fallthru
      _
    // Predicated region
    $region18: #{tpu_custom_call.1} parent=1 // pred_check
      _
    $region19: #{tpu_custom_call.1} parent=1 // pred_check_branch
      %47 = sbr.rel (0) target = $region21
    $region20: #{tpu_custom_call.1} parent=1 // pred_region
      %48 = dma.done [#allocation6], 81920
    $region21: #{tpu_custom_call.1} parent=1 // pred_fallthru
      _
    // Predicated region
    $region22: #{tpu_custom_call.1} parent=1 // pred_check
      _
    $region23: #{tpu_custom_call.1} parent=1 // pred_check_branch
      %50 = sbr.rel (0) target = $region25
    $region24: #{tpu_custom_call.1} parent=1 // pred_region
      %51 = dma.done [#allocation6], 128
    $region25: #{tpu_custom_call.1} parent=1 // pred_fallthru
      _
    %v52 = vld [vmem:[#allocation2] sm:$0x1f]
    %v53 = vld [vmem:[#allocation5] sm:$0xff]
    %v54 = vld [vmem:[#allocation5 + $0x8] sm:$0xff]
    %v55 = vld [vmem:[#allocation5 + $0x10] sm:$0xff]
    %v56 = vld [vmem:[#allocation5 + $0x18] sm:$0xff]
    %v57 = vld [vmem:[#allocation5 + $0x20] sm:$0xff]
    %v58 = vld [vmem:[#allocation5 + $0x28] sm:$0xff]
    %v59 = vld [vmem:[#allocation5 + $0x30] sm:$0xff]
    %v60 = vld [vmem:[#allocation5 + $0x38] sm:$0xff]
    %v61 = vld [vmem:[#allocation5 + $0x40] sm:$0xff]
    %v62 = vld [vmem:[#allocation5 + $0x48] sm:$0xff]
    %v63 = vld [vmem:[#allocation5 + $0x50] sm:$0xff]
    %v64 = vld [vmem:[#allocation5 + $0x58] sm:$0xff]
    %v65 = vld [vmem:[#allocation5 + $0x60] sm:$0xff]
    %v66 = vld [vmem:[#allocation5 + $0x68] sm:$0xff]
    %v67 = vld [vmem:[#allocation5 + $0x70] sm:$0xff]
    %v68 = vld [vmem:[#allocation5 + $0x78] sm:$0xff]
    %v69 = vld [vmem:[#allocation5 + $0x80] sm:$0xff]
    %v70 = vld [vmem:[#allocation5 + $0x88] sm:$0xff]
    %v71 = vld [vmem:[#allocation5 + $0x90] sm:$0xff]
    %v72 = vld [vmem:[#allocation5 + $0x98] sm:$0xff]
    %v73 = vld [vmem:[#allocation5 + $0xa0] sm:$0xff]
    %v74 = vld [vmem:[#allocation5 + $0xa8] sm:$0xff]
    %v75 = vld [vmem:[#allocation5 + $0xb0] sm:$0xff]
    %v76 = vld [vmem:[#allocation5 + $0xb8] sm:$0xff]
    %v77 = vld [vmem:[#allocation5 + $0xc0] sm:$0xff]
    %v78 = vld [vmem:[#allocation5 + $0xc8] sm:$0xff]
    %v79 = vld [vmem:[#allocation5 + $0xd0] sm:$0xff]
    %v80 = vld [vmem:[#allocation5 + $0xd8] sm:$0xff]
    %v81 = vld [vmem:[#allocation5 + $0xe0] sm:$0xff]
    %v82 = vld [vmem:[#allocation5 + $0xe8] sm:$0xff]
    %v83 = vld [vmem:[#allocation5 + $0xf0] sm:$0xff]
    %v84 = vld [vmem:[#allocation5 + $0xf8] sm:$0xff]
    %v85 = vld [vmem:[#allocation5 + $0x100] sm:$0xff]
    %v86 = vld [vmem:[#allocation5 + $0x108] sm:$0xff]
    %v87 = vld [vmem:[#allocation5 + $0x110] sm:$0xff]
    %v88 = vld [vmem:[#allocation5 + $0x118] sm:$0xff]
    %v89 = vld [vmem:[#allocation5 + $0x120] sm:$0xff]
    %v90 = vld [vmem:[#allocation5 + $0x128] sm:$0xff]
    %v91 = vld [vmem:[#allocation5 + $0x130] sm:$0xff]
    %v92 = vld [vmem:[#allocation5 + $0x138] sm:$0xff]
    %v93 = vld [vmem:[#allocation5 + $0x140] sm:$0xff]
    %v94 = vld [vmem:[#allocation5 + $0x148] sm:$0xff]
    %v95 = vld [vmem:[#allocation5 + $0x150] sm:$0xff]
    %v96 = vld [vmem:[#allocation5 + $0x158] sm:$0xff]
    %v97 = vld [vmem:[#allocation5 + $0x160] sm:$0xff]
    %v98 = vld [vmem:[#allocation5 + $0x168] sm:$0xff]
    %v99 = vld [vmem:[#allocation5 + $0x170] sm:$0xff]
    %v100 = vld [vmem:[#allocation5 + $0x178] sm:$0xff]
    %v101 = vld [vmem:[#allocation5 + $0x180] sm:$0xff]
    %v102 = vld [vmem:[#allocation5 + $0x188] sm:$0xff]
    %v103 = vld [vmem:[#allocation5 + $0x190] sm:$0xff]
    %v104 = vld [vmem:[#allocation5 + $0x198] sm:$0xff]
    %v105 = vld [vmem:[#allocation5 + $0x1a0] sm:$0xff]
    %v106 = vld [vmem:[#allocation5 + $0x1a8] sm:$0xff]
    %v107 = vld [vmem:[#allocation5 + $0x1b0] sm:$0xff]
    %v108 = vld [vmem:[#allocation5 + $0x1b8] sm:$0xff]
    %v109 = vld [vmem:[#allocation5 + $0x1c0] sm:$0xff]
    %v110 = vld [vmem:[#allocation5 + $0x1c8] sm:$0xff]
    %v111 = vld [vmem:[#allocation5 + $0x1d0] sm:$0xff]
    %v112 = vld [vmem:[#allocation5 + $0x1d8] sm:$0xff]
    %v113 = vld [vmem:[#allocation5 + $0x1e0] sm:$0xff]
    %v114 = vld [vmem:[#allocation5 + $0x1e8] sm:$0xff]
    %v115 = vld [vmem:[#allocation5 + $0x1f0] sm:$0xff]
    %v116 = vld [vmem:[#allocation5 + $0x1f8] sm:$0xff]
    %v117 = vld [vmem:[#allocation5 + $0x200] sm:$0xff]
    %v118 = vld [vmem:[#allocation5 + $0x208] sm:$0xff]
    %v119 = vld [vmem:[#allocation5 + $0x210] sm:$0xff]
    %v120 = vld [vmem:[#allocation5 + $0x218] sm:$0xff]
    %v121 = vld [vmem:[#allocation5 + $0x220] sm:$0xff]
    %v122 = vld [vmem:[#allocation5 + $0x228] sm:$0xff]
    %v123 = vld [vmem:[#allocation5 + $0x230] sm:$0xff]
    %v124 = vld [vmem:[#allocation5 + $0x238] sm:$0xff]
    %v125 = vld [vmem:[#allocation5 + $0x240] sm:$0xff]
    %v126 = vld [vmem:[#allocation5 + $0x248] sm:$0xff]
    %v127 = vld [vmem:[#allocation5 + $0x250] sm:$0xff]
    %v128 = vld [vmem:[#allocation5 + $0x258] sm:$0xff]
    %v129 = vld [vmem:[#allocation5 + $0x260] sm:$0xff]
    %v130 = vld [vmem:[#allocation5 + $0x268] sm:$0xff]
    %v131 = vld [vmem:[#allocation5 + $0x270] sm:$0xff]
    %v132 = vld [vmem:[#allocation5 + $0x278] sm:$0xff]
    %v133 = vld [vmem:[#allocation5 + $0x280] sm:$0xff]
    %v134 = vld [vmem:[#allocation5 + $0x288] sm:$0xff]
    %v135 = vld [vmem:[#allocation5 + $0x290] sm:$0xff]
    %v136 = vld [vmem:[#allocation5 + $0x298] sm:$0xff]
    %v137 = vld [vmem:[#allocation5 + $0x2a0] sm:$0xff]
    %v138 = vld [vmem:[#allocation5 + $0x2a8] sm:$0xff]
    %v139 = vld [vmem:[#allocation5 + $0x2b0] sm:$0xff]
    %v140 = vld [vmem:[#allocation5 + $0x2b8] sm:$0xff]
    %v141 = vld [vmem:[#allocation5 + $0x2c0] sm:$0xff]
    %v142 = vld [vmem:[#allocation5 + $0x2c8] sm:$0xff]
    %v143 = vld [vmem:[#allocation5 + $0x2d0] sm:$0xff]
    %v144 = vld [vmem:[#allocation5 + $0x2d8] sm:$0xff]
    %v145 = vld [vmem:[#allocation5 + $0x2e0] sm:$0xff]
    %v146 = vld [vmem:[#allocation5 + $0x2e8] sm:$0xff]
    %v147 = vld [vmem:[#allocation5 + $0x2f0] sm:$0xff]
    %v148 = vld [vmem:[#allocation5 + $0x2f8] sm:$0xff]
    %v149 = vld [vmem:[#allocation5 + $0x300] sm:$0xff]
    %v150 = vld [vmem:[#allocation5 + $0x308] sm:$0xff]
    %v151 = vld [vmem:[#allocation5 + $0x310] sm:$0xff]
    %v152 = vld [vmem:[#allocation5 + $0x318] sm:$0xff]
    %v153 = vld [vmem:[#allocation5 + $0x320] sm:$0xff]
    %v154 = vld [vmem:[#allocation5 + $0x328] sm:$0xff]
    %v155 = vld [vmem:[#allocation5 + $0x330] sm:$0xff]
    %v156 = vld [vmem:[#allocation5 + $0x338] sm:$0xff]
    %v157 = vld [vmem:[#allocation5 + $0x340] sm:$0xff]
    %v158 = vld [vmem:[#allocation5 + $0x348] sm:$0xff]
    %v159 = vld [vmem:[#allocation5 + $0x350] sm:$0xff]
    %v160 = vld [vmem:[#allocation5 + $0x358] sm:$0xff]
    %v161 = vld [vmem:[#allocation5 + $0x360] sm:$0xff]
    %v162 = vld [vmem:[#allocation5 + $0x368] sm:$0xff]
    %v163 = vld [vmem:[#allocation5 + $0x370] sm:$0xff]
    %v164 = vld [vmem:[#allocation5 + $0x378] sm:$0xff]
    %v165 = vld [vmem:[#allocation5 + $0x380] sm:$0xff]
    %v166 = vld [vmem:[#allocation5 + $0x388] sm:$0xff]
    %v167 = vld [vmem:[#allocation5 + $0x390] sm:$0xff]
    %v168 = vld [vmem:[#allocation5 + $0x398] sm:$0xff]
    %v169 = vld [vmem:[#allocation5 + $0x3a0] sm:$0xff]
    %v170 = vld [vmem:[#allocation5 + $0x3a8] sm:$0xff]
    %v171 = vld [vmem:[#allocation5 + $0x3b0] sm:$0xff]
    %v172 = vld [vmem:[#allocation5 + $0x3b8] sm:$0xff]
    %v173 = vld [vmem:[#allocation5 + $0x3c0] sm:$0xff]
    %v174 = vld [vmem:[#allocation5 + $0x3c8] sm:$0xff]
    %v175 = vld [vmem:[#allocation5 + $0x3d0] sm:$0xff]
    %v176 = vld [vmem:[#allocation5 + $0x3d8] sm:$0xff]
    %v177 = vld [vmem:[#allocation5 + $0x3e0] sm:$0xff]
    %v178 = vld [vmem:[#allocation5 + $0x3e8] sm:$0xff]
    %v179 = vld [vmem:[#allocation5 + $0x3f0] sm:$0xff]
    %v180 = vld [vmem:[#allocation5 + $0x3f8] sm:$0xff]
    %v181 = vld [vmem:[#allocation5 + $0x400] sm:$0xff]
    %v182 = vld [vmem:[#allocation5 + $0x408] sm:$0xff]
    %v183 = vld [vmem:[#allocation5 + $0x410] sm:$0xff]
    %v184 = vld [vmem:[#allocation5 + $0x418] sm:$0xff]
    %v185 = vld [vmem:[#allocation5 + $0x420] sm:$0xff]
    %v186 = vld [vmem:[#allocation5 + $0x428] sm:$0xff]
    %v187 = vld [vmem:[#allocation5 + $0x430] sm:$0xff]
    %v188 = vld [vmem:[#allocation5 + $0x438] sm:$0xff]
    %v189 = vld [vmem:[#allocation5 + $0x440] sm:$0xff]
    %v190 = vld [vmem:[#allocation5 + $0x448] sm:$0xff]
    %v191 = vld [vmem:[#allocation5 + $0x450] sm:$0xff]
    %v192 = vld [vmem:[#allocation5 + $0x458] sm:$0xff]
    %v193 = vld [vmem:[#allocation5 + $0x460] sm:$0xff]
    %v194 = vld [vmem:[#allocation5 + $0x468] sm:$0xff]
    %v195 = vld [vmem:[#allocation5 + $0x470] sm:$0xff]
    %v196 = vld [vmem:[#allocation5 + $0x478] sm:$0xff]
    %v197 = vld [vmem:[#allocation5 + $0x480] sm:$0xff]
    %v198 = vld [vmem:[#allocation5 + $0x488] sm:$0xff]
    %v199 = vld [vmem:[#allocation5 + $0x490] sm:$0xff]
    %v200 = vld [vmem:[#allocation5 + $0x498] sm:$0xff]
    %v201 = vld [vmem:[#allocation5 + $0x4a0] sm:$0xff]
    %v202 = vld [vmem:[#allocation5 + $0x4a8] sm:$0xff]
    %v203 = vld [vmem:[#allocation5 + $0x4b0] sm:$0xff]
    %v204 = vld [vmem:[#allocation5 + $0x4b8] sm:$0xff]
    %v205 = vld [vmem:[#allocation5 + $0x4c0] sm:$0xff]
    %v206 = vld [vmem:[#allocation5 + $0x4c8] sm:$0xff]
    %v207 = vld [vmem:[#allocation5 + $0x4d0] sm:$0xff]
    %v208 = vld [vmem:[#allocation5 + $0x4d8] sm:$0xff]
    %v209 = vld [vmem:[#allocation5 + $0x4e0] sm:$0xff]
    %v210 = vld [vmem:[#allocation5 + $0x4e8] sm:$0xff]
    %v211 = vld [vmem:[#allocation5 + $0x4f0] sm:$0xff]
    %v212 = vld [vmem:[#allocation5 + $0x4f8] sm:$0xff]
    %v213 = vld [vmem:[#allocation5 + $0x500] sm:$0xff]
    %v214 = vld [vmem:[#allocation5 + $0x508] sm:$0xff]
    %v215 = vld [vmem:[#allocation5 + $0x510] sm:$0xff]
    %v216 = vld [vmem:[#allocation5 + $0x518] sm:$0xff]
    %v217 = vld [vmem:[#allocation5 + $0x520] sm:$0xff]
    %v218 = vld [vmem:[#allocation5 + $0x528] sm:$0xff]
    %v219 = vld [vmem:[#allocation5 + $0x530] sm:$0xff]
    %v220 = vld [vmem:[#allocation5 + $0x538] sm:$0xff]
    %v221 = vld [vmem:[#allocation5 + $0x540] sm:$0xff]
    %v222 = vld [vmem:[#allocation5 + $0x548] sm:$0xff]
    %v223 = vld [vmem:[#allocation5 + $0x550] sm:$0xff]
    %v224 = vld [vmem:[#allocation5 + $0x558] sm:$0xff]
    %v225 = vld [vmem:[#allocation5 + $0x560] sm:$0xff]
    %v226 = vld [vmem:[#allocation5 + $0x568] sm:$0xff]
    %v227 = vld [vmem:[#allocation5 + $0x570] sm:$0xff]
    %v228 = vld [vmem:[#allocation5 + $0x578] sm:$0xff]
    %v229 = vld [vmem:[#allocation5 + $0x580] sm:$0xff]
    %v230 = vld [vmem:[#allocation5 + $0x588] sm:$0xff]
    %v231 = vld [vmem:[#allocation5 + $0x590] sm:$0xff]
    %v232 = vld [vmem:[#allocation5 + $0x598] sm:$0xff]
    %v233 = vld [vmem:[#allocation5 + $0x5a0] sm:$0xff]
    %v234 = vld [vmem:[#allocation5 + $0x5a8] sm:$0xff]
    %v235 = vld [vmem:[#allocation5 + $0x5b0] sm:$0xff]
    %v236 = vld [vmem:[#allocation5 + $0x5b8] sm:$0xff]
    %v237 = vld [vmem:[#allocation5 + $0x5c0] sm:$0xff]
    %v238 = vld [vmem:[#allocation5 + $0x5c8] sm:$0xff]
    %v239 = vld [vmem:[#allocation5 + $0x5d0] sm:$0xff]
    %v240 = vld [vmem:[#allocation5 + $0x5d8] sm:$0xff]
    %v241 = vld [vmem:[#allocation5 + $0x5e0] sm:$0xff]
    %v242 = vld [vmem:[#allocation5 + $0x5e8] sm:$0xff]
    %v243 = vld [vmem:[#allocation5 + $0x5f0] sm:$0xff]
    %v244 = vld [vmem:[#allocation5 + $0x5f8] sm:$0xff]
    %v245 = vld [vmem:[#allocation5 + $0x600] sm:$0xff]
    %v246 = vld [vmem:[#allocation5 + $0x608] sm:$0xff]
    %v247 = vld [vmem:[#allocation5 + $0x610] sm:$0xff]
    %v248 = vld [vmem:[#allocation5 + $0x618] sm:$0xff]
    %v249 = vld [vmem:[#allocation5 + $0x620] sm:$0xff]
    %v250 = vld [vmem:[#allocation5 + $0x628] sm:$0xff]
    %v251 = vld [vmem:[#allocation5 + $0x630] sm:$0xff]
    %v252 = vld [vmem:[#allocation5 + $0x638] sm:$0xff]
    %v253 = vld [vmem:[#allocation5 + $0x640] sm:$0xff]
    %v254 = vld [vmem:[#allocation5 + $0x648] sm:$0xff]
    %v255 = vld [vmem:[#allocation5 + $0x650] sm:$0xff]
    %v256 = vld [vmem:[#allocation5 + $0x658] sm:$0xff]
    %v257 = vld [vmem:[#allocation5 + $0x660] sm:$0xff]
    %v258 = vld [vmem:[#allocation5 + $0x668] sm:$0xff]
    %v259 = vld [vmem:[#allocation5 + $0x670] sm:$0xff]
    %v260 = vld [vmem:[#allocation5 + $0x678] sm:$0xff]
    %v261 = vld [vmem:[#allocation5 + $0x680] sm:$0xff]
    %v262 = vld [vmem:[#allocation5 + $0x688] sm:$0xff]
    %v263 = vld [vmem:[#allocation5 + $0x690] sm:$0xff]
    %v264 = vld [vmem:[#allocation5 + $0x698] sm:$0xff]
    %v265 = vld [vmem:[#allocation5 + $0x6a0] sm:$0xff]
    %v266 = vld [vmem:[#allocation5 + $0x6a8] sm:$0xff]
    %v267 = vld [vmem:[#allocation5 + $0x6b0] sm:$0xff]
    %v268 = vld [vmem:[#allocation5 + $0x6b8] sm:$0xff]
    %v269 = vld [vmem:[#allocation5 + $0x6c0] sm:$0xff]
    %v270 = vld [vmem:[#allocation5 + $0x6c8] sm:$0xff]
    %v271 = vld [vmem:[#allocation5 + $0x6d0] sm:$0xff]
    %v272 = vld [vmem:[#allocation5 + $0x6d8] sm:$0xff]
    %v273 = vld [vmem:[#allocation5 + $0x6e0] sm:$0xff]
    %v274 = vld [vmem:[#allocation5 + $0x6e8] sm:$0xff]
    %v275 = vld [vmem:[#allocation5 + $0x6f0] sm:$0xff]
    %v276 = vld [vmem:[#allocation5 + $0x6f8] sm:$0xff]
    %v277 = vld [vmem:[#allocation5 + $0x700] sm:$0xff]
    %v278 = vld [vmem:[#allocation5 + $0x708] sm:$0xff]
    %v279 = vld [vmem:[#allocation5 + $0x710] sm:$0xff]
    %v280 = vld [vmem:[#allocation5 + $0x718] sm:$0xff]
    %v281 = vld [vmem:[#allocation5 + $0x720] sm:$0xff]
    %v282 = vld [vmem:[#allocation5 + $0x728] sm:$0xff]
    %v283 = vld [vmem:[#allocation5 + $0x730] sm:$0xff]
    %v284 = vld [vmem:[#allocation5 + $0x738] sm:$0xff]
    %v285 = vld [vmem:[#allocation5 + $0x740] sm:$0xff]
    %v286 = vld [vmem:[#allocation5 + $0x748] sm:$0xff]
    %v287 = vld [vmem:[#allocation5 + $0x750] sm:$0xff]
    %v288 = vld [vmem:[#allocation5 + $0x758] sm:$0xff]
    %v289 = vld [vmem:[#allocation5 + $0x760] sm:$0xff]
    %v290 = vld [vmem:[#allocation5 + $0x768] sm:$0xff]
    %v291 = vld [vmem:[#allocation5 + $0x770] sm:$0xff]
    %v292 = vld [vmem:[#allocation5 + $0x778] sm:$0xff]
    %v293 = vld [vmem:[#allocation5 + $0x780] sm:$0xff]
    %v294 = vld [vmem:[#allocation5 + $0x788] sm:$0xff]
    %v295 = vld [vmem:[#allocation5 + $0x790] sm:$0xff]
    %v296 = vld [vmem:[#allocation5 + $0x798] sm:$0xff]
    %v297 = vld [vmem:[#allocation5 + $0x7a0] sm:$0xff]
    %v298 = vld [vmem:[#allocation5 + $0x7a8] sm:$0xff]
    %v299 = vld [vmem:[#allocation5 + $0x7b0] sm:$0xff]
    %v300 = vld [vmem:[#allocation5 + $0x7b8] sm:$0xff]
    %v301 = vld [vmem:[#allocation5 + $0x7c0] sm:$0xff]
    %v302 = vld [vmem:[#allocation5 + $0x7c8] sm:$0xff]
    %v303 = vld [vmem:[#allocation5 + $0x7d0] sm:$0xff]
    %v304 = vld [vmem:[#allocation5 + $0x7d8] sm:$0xff]
    %v305 = vld [vmem:[#allocation5 + $0x7e0] sm:$0xff]
    %v306 = vld [vmem:[#allocation5 + $0x7e8] sm:$0xff]
    %v307 = vld [vmem:[#allocation5 + $0x7f0] sm:$0xff]
    %v308 = vld [vmem:[#allocation5 + $0x7f8] sm:$0xff]
    %v309 = vld [vmem:[#allocation5 + $0x800] sm:$0xff]
    %v310 = vld [vmem:[#allocation5 + $0x808] sm:$0xff]
    %v311 = vld [vmem:[#allocation5 + $0x810] sm:$0xff]
    %v312 = vld [vmem:[#allocation5 + $0x818] sm:$0xff]
    %v313 = vld [vmem:[#allocation5 + $0x820] sm:$0xff]
    %v314 = vld [vmem:[#allocation5 + $0x828] sm:$0xff]
    %v315 = vld [vmem:[#allocation5 + $0x830] sm:$0xff]
    %v316 = vld [vmem:[#allocation5 + $0x838] sm:$0xff]
    %v317 = vld [vmem:[#allocation5 + $0x840] sm:$0xff]
    %v318 = vld [vmem:[#allocation5 + $0x848] sm:$0xff]
    %v319 = vld [vmem:[#allocation5 + $0x850] sm:$0xff]
    %v320 = vld [vmem:[#allocation5 + $0x858] sm:$0xff]
    %v321 = vld [vmem:[#allocation5 + $0x860] sm:$0xff]
    %v322 = vld [vmem:[#allocation5 + $0x868] sm:$0xff]
    %v323 = vld [vmem:[#allocation5 + $0x870] sm:$0xff]
    %v324 = vld [vmem:[#allocation5 + $0x878] sm:$0xff]
    %v325 = vld [vmem:[#allocation5 + $0x880] sm:$0xff]
    %v326 = vld [vmem:[#allocation5 + $0x888] sm:$0xff]
    %v327 = vld [vmem:[#allocation5 + $0x890] sm:$0xff]
    %v328 = vld [vmem:[#allocation5 + $0x898] sm:$0xff]
    %v329 = vld [vmem:[#allocation5 + $0x8a0] sm:$0xff]
    %v330 = vld [vmem:[#allocation5 + $0x8a8] sm:$0xff]
    %v331 = vld [vmem:[#allocation5 + $0x8b0] sm:$0xff]
    %v332 = vld [vmem:[#allocation5 + $0x8b8] sm:$0xff]
    %v333 = vld [vmem:[#allocation5 + $0x8c0] sm:$0xff]
    %v334 = vld [vmem:[#allocation5 + $0x8c8] sm:$0xff]
    %v335 = vld [vmem:[#allocation5 + $0x8d0] sm:$0xff]
    %v336 = vld [vmem:[#allocation5 + $0x8d8] sm:$0xff]
    %v337 = vld [vmem:[#allocation5 + $0x8e0] sm:$0xff]
    %v338 = vld [vmem:[#allocation5 + $0x8e8] sm:$0xff]
    %v339 = vld [vmem:[#allocation5 + $0x8f0] sm:$0xff]
    %v340 = vld [vmem:[#allocation5 + $0x8f8] sm:$0xff]
    %v341 = vld [vmem:[#allocation5 + $0x900] sm:$0xff]
    %v342 = vld [vmem:[#allocation5 + $0x908] sm:$0xff]
    %v343 = vld [vmem:[#allocation5 + $0x910] sm:$0xff]
    %v344 = vld [vmem:[#allocation5 + $0x918] sm:$0xff]
    %v345 = vld [vmem:[#allocation5 + $0x920] sm:$0xff]
    %v346 = vld [vmem:[#allocation5 + $0x928] sm:$0xff]
    %v347 = vld [vmem:[#allocation5 + $0x930] sm:$0xff]
    %v348 = vld [vmem:[#allocation5 + $0x938] sm:$0xff]
    %v349 = vld [vmem:[#allocation5 + $0x940] sm:$0xff]
    %v350 = vld [vmem:[#allocation5 + $0x948] sm:$0xff]
    %v351 = vld [vmem:[#allocation5 + $0x950] sm:$0xff]
    %v352 = vld [vmem:[#allocation5 + $0x958] sm:$0xff]
    %v353 = vld [vmem:[#allocation5 + $0x960] sm:$0xff]
    %v354 = vld [vmem:[#allocation5 + $0x968] sm:$0xff]
    %v355 = vld [vmem:[#allocation5 + $0x970] sm:$0xff]
    %v356 = vld [vmem:[#allocation5 + $0x978] sm:$0xff]
    %v357 = vld [vmem:[#allocation5 + $0x980] sm:$0xff]
    %v358 = vld [vmem:[#allocation5 + $0x988] sm:$0xff]
    %v359 = vld [vmem:[#allocation5 + $0x990] sm:$0xff]
    %v360 = vld [vmem:[#allocation5 + $0x998] sm:$0xff]
    %v361 = vld [vmem:[#allocation5 + $0x9a0] sm:$0xff]
    %v362 = vld [vmem:[#allocation5 + $0x9a8] sm:$0xff]
    %v363 = vld [vmem:[#allocation5 + $0x9b0] sm:$0xff]
    %v364 = vld [vmem:[#allocation5 + $0x9b8] sm:$0xff]
    %v365 = vld [vmem:[#allocation5 + $0x9c0] sm:$0xff]
    %v366 = vld [vmem:[#allocation5 + $0x9c8] sm:$0xff]
    %v367 = vld [vmem:[#allocation5 + $0x9d0] sm:$0xff]
    %v368 = vld [vmem:[#allocation5 + $0x9d8] sm:$0xff]
    %v369 = vld [vmem:[#allocation5 + $0x9e0] sm:$0xff]
    %v370 = vld [vmem:[#allocation5 + $0x9e8] sm:$0xff]
    %v371 = vld [vmem:[#allocation5 + $0x9f0] sm:$0xff]
    %v372 = vld [vmem:[#allocation5 + $0x9f8] sm:$0xff]
    %v373 = vld [vmem:[#allocation5 + $0xa00] sm:$0xff]
    %v374 = vld [vmem:[#allocation5 + $0xa08] sm:$0xff]
    %v375 = vld [vmem:[#allocation5 + $0xa10] sm:$0xff]
    %v376 = vld [vmem:[#allocation5 + $0xa18] sm:$0xff]
    %v377 = vld [vmem:[#allocation5 + $0xa20] sm:$0xff]
    %v378 = vld [vmem:[#allocation5 + $0xa28] sm:$0xff]
    %v379 = vld [vmem:[#allocation5 + $0xa30] sm:$0xff]
    %v380 = vld [vmem:[#allocation5 + $0xa38] sm:$0xff]
    %v381 = vld [vmem:[#allocation5 + $0xa40] sm:$0xff]
    %v382 = vld [vmem:[#allocation5 + $0xa48] sm:$0xff]
    %v383 = vld [vmem:[#allocation5 + $0xa50] sm:$0xff]
    %v384 = vld [vmem:[#allocation5 + $0xa58] sm:$0xff]
    %v385 = vld [vmem:[#allocation5 + $0xa60] sm:$0xff]
    %v386 = vld [vmem:[#allocation5 + $0xa68] sm:$0xff]
    %v387 = vld [vmem:[#allocation5 + $0xa70] sm:$0xff]
    %v388 = vld [vmem:[#allocation5 + $0xa78] sm:$0xff]
    %v389 = vld [vmem:[#allocation5 + $0xa80] sm:$0xff]
    %v390 = vld [vmem:[#allocation5 + $0xa88] sm:$0xff]
    %v391 = vld [vmem:[#allocation5 + $0xa90] sm:$0xff]
    %v392 = vld [vmem:[#allocation5 + $0xa98] sm:$0xff]
    %v393 = vld [vmem:[#allocation5 + $0xaa0] sm:$0xff]
    %v394 = vld [vmem:[#allocation5 + $0xaa8] sm:$0xff]
    %v395 = vld [vmem:[#allocation5 + $0xab0] sm:$0xff]
    %v396 = vld [vmem:[#allocation5 + $0xab8] sm:$0xff]
    %v397 = vld [vmem:[#allocation5 + $0xac0] sm:$0xff]
    %v398 = vld [vmem:[#allocation5 + $0xac8] sm:$0xff]
    %v399 = vld [vmem:[#allocation5 + $0xad0] sm:$0xff]
    %v400 = vld [vmem:[#allocation5 + $0xad8] sm:$0xff]
    %v401 = vld [vmem:[#allocation5 + $0xae0] sm:$0xff]
    %v402 = vld [vmem:[#allocation5 + $0xae8] sm:$0xff]
    %v403 = vld [vmem:[#allocation5 + $0xaf0] sm:$0xff]
    %v404 = vld [vmem:[#allocation5 + $0xaf8] sm:$0xff]
    %v405 = vld [vmem:[#allocation5 + $0xb00] sm:$0xff]
    %v406 = vld [vmem:[#allocation5 + $0xb08] sm:$0xff]
    %v407 = vld [vmem:[#allocation5 + $0xb10] sm:$0xff]
    %v408 = vld [vmem:[#allocation5 + $0xb18] sm:$0xff]
    %v409 = vld [vmem:[#allocation5 + $0xb20] sm:$0xff]
    %v410 = vld [vmem:[#allocation5 + $0xb28] sm:$0xff]
    %v411 = vld [vmem:[#allocation5 + $0xb30] sm:$0xff]
    %v412 = vld [vmem:[#allocation5 + $0xb38] sm:$0xff]
    %v413 = vld [vmem:[#allocation5 + $0xb40] sm:$0xff]
    %v414 = vld [vmem:[#allocation5 + $0xb48] sm:$0xff]
    %v415 = vld [vmem:[#allocation5 + $0xb50] sm:$0xff]
    %v416 = vld [vmem:[#allocation5 + $0xb58] sm:$0xff]
    %v417 = vld [vmem:[#allocation5 + $0xb60] sm:$0xff]
    %v418 = vld [vmem:[#allocation5 + $0xb68] sm:$0xff]
    %v419 = vld [vmem:[#allocation5 + $0xb70] sm:$0xff]
    %v420 = vld [vmem:[#allocation5 + $0xb78] sm:$0xff]
    %v421 = vld [vmem:[#allocation5 + $0xb80] sm:$0xff]
    %v422 = vld [vmem:[#allocation5 + $0xb88] sm:$0xff]
    %v423 = vld [vmem:[#allocation5 + $0xb90] sm:$0xff]
    %v424 = vld [vmem:[#allocation5 + $0xb98] sm:$0xff]
    %v425 = vld [vmem:[#allocation5 + $0xba0] sm:$0xff]
    %v426 = vld [vmem:[#allocation5 + $0xba8] sm:$0xff]
    %v427 = vld [vmem:[#allocation5 + $0xbb0] sm:$0xff]
    %v428 = vld [vmem:[#allocation5 + $0xbb8] sm:$0xff]
    %v429 = vld [vmem:[#allocation5 + $0xbc0] sm:$0xff]
    %v430 = vld [vmem:[#allocation5 + $0xbc8] sm:$0xff]
    %v431 = vld [vmem:[#allocation5 + $0xbd0] sm:$0xff]
    %v432 = vld [vmem:[#allocation5 + $0xbd8] sm:$0xff]
    %v433 = vld [vmem:[#allocation5 + $0xbe0] sm:$0xff]
    %v434 = vld [vmem:[#allocation5 + $0xbe8] sm:$0xff]
    %v435 = vld [vmem:[#allocation5 + $0xbf0] sm:$0xff]
    %v436 = vld [vmem:[#allocation5 + $0xbf8] sm:$0xff]
    %v437 = vld [vmem:[#allocation5 + $0xc00] sm:$0xff]
    %v438 = vld [vmem:[#allocation5 + $0xc08] sm:$0xff]
    %v439 = vld [vmem:[#allocation5 + $0xc10] sm:$0xff]
    %v440 = vld [vmem:[#allocation5 + $0xc18] sm:$0xff]
    %v441 = vld [vmem:[#allocation5 + $0xc20] sm:$0xff]
    %v442 = vld [vmem:[#allocation5 + $0xc28] sm:$0xff]
    %v443 = vld [vmem:[#allocation5 + $0xc30] sm:$0xff]
    %v444 = vld [vmem:[#allocation5 + $0xc38] sm:$0xff]
    %v445 = vld [vmem:[#allocation5 + $0xc40] sm:$0xff]
    %v446 = vld [vmem:[#allocation5 + $0xc48] sm:$0xff]
    %v447 = vld [vmem:[#allocation5 + $0xc50] sm:$0xff]
    %v448 = vld [vmem:[#allocation5 + $0xc58] sm:$0xff]
    %v449 = vld [vmem:[#allocation5 + $0xc60] sm:$0xff]
    %v450 = vld [vmem:[#allocation5 + $0xc68] sm:$0xff]
    %v451 = vld [vmem:[#allocation5 + $0xc70] sm:$0xff]
    %v452 = vld [vmem:[#allocation5 + $0xc78] sm:$0xff]
    %v453 = vld [vmem:[#allocation5 + $0xc80] sm:$0xff]
    %v454 = vld [vmem:[#allocation5 + $0xc88] sm:$0xff]
    %v455 = vld [vmem:[#allocation5 + $0xc90] sm:$0xff]
    %v456 = vld [vmem:[#allocation5 + $0xc98] sm:$0xff]
    %v457 = vld [vmem:[#allocation5 + $0xca0] sm:$0xff]
    %v458 = vld [vmem:[#allocation5 + $0xca8] sm:$0xff]
    %v459 = vld [vmem:[#allocation5 + $0xcb0] sm:$0xff]
    %v460 = vld [vmem:[#allocation5 + $0xcb8] sm:$0xff]
    %v461 = vld [vmem:[#allocation5 + $0xcc0] sm:$0xff]
    %v462 = vld [vmem:[#allocation5 + $0xcc8] sm:$0xff]
    %v463 = vld [vmem:[#allocation5 + $0xcd0] sm:$0xff]
    %v464 = vld [vmem:[#allocation5 + $0xcd8] sm:$0xff]
    %v465 = vld [vmem:[#allocation5 + $0xce0] sm:$0xff]
    %v466 = vld [vmem:[#allocation5 + $0xce8] sm:$0xff]
    %v467 = vld [vmem:[#allocation5 + $0xcf0] sm:$0xff]
    %v468 = vld [vmem:[#allocation5 + $0xcf8] sm:$0xff]
    %v469 = vld [vmem:[#allocation5 + $0xd00] sm:$0xff]
    %v470 = vld [vmem:[#allocation5 + $0xd08] sm:$0xff]
    %v471 = vld [vmem:[#allocation5 + $0xd10] sm:$0xff]
    %v472 = vld [vmem:[#allocation5 + $0xd18] sm:$0xff]
    %v473 = vld [vmem:[#allocation5 + $0xd20] sm:$0xff]
    %v474 = vld [vmem:[#allocation5 + $0xd28] sm:$0xff]
    %v475 = vld [vmem:[#allocation5 + $0xd30] sm:$0xff]
    %v476 = vld [vmem:[#allocation5 + $0xd38] sm:$0xff]
    %v477 = vld [vmem:[#allocation5 + $0xd40] sm:$0xff]
    %v478 = vld [vmem:[#allocation5 + $0xd48] sm:$0xff]
    %v479 = vld [vmem:[#allocation5 + $0xd50] sm:$0xff]
    %v480 = vld [vmem:[#allocation5 + $0xd58] sm:$0xff]
    %v481 = vld [vmem:[#allocation5 + $0xd60] sm:$0xff]
    %v482 = vld [vmem:[#allocation5 + $0xd68] sm:$0xff]
    %v483 = vld [vmem:[#allocation5 + $0xd70] sm:$0xff]
    %v484 = vld [vmem:[#allocation5 + $0xd78] sm:$0xff]
    %v485 = vld [vmem:[#allocation5 + $0xd80] sm:$0xff]
    %v486 = vld [vmem:[#allocation5 + $0xd88] sm:$0xff]
    %v487 = vld [vmem:[#allocation5 + $0xd90] sm:$0xff]
    %v488 = vld [vmem:[#allocation5 + $0xd98] sm:$0xff]
    %v489 = vld [vmem:[#allocation5 + $0xda0] sm:$0xff]
    %v490 = vld [vmem:[#allocation5 + $0xda8] sm:$0xff]
    %v491 = vld [vmem:[#allocation5 + $0xdb0] sm:$0xff]
    %v492 = vld [vmem:[#allocation5 + $0xdb8] sm:$0xff]
    %v493 = vld [vmem:[#allocation5 + $0xdc0] sm:$0xff]
    %v494 = vld [vmem:[#allocation5 + $0xdc8] sm:$0xff]
    %v495 = vld [vmem:[#allocation5 + $0xdd0] sm:$0xff]
    %v496 = vld [vmem:[#allocation5 + $0xdd8] sm:$0xff]
    %v497 = vld [vmem:[#allocation5 + $0xde0] sm:$0xff]
    %v498 = vld [vmem:[#allocation5 + $0xde8] sm:$0xff]
    %v499 = vld [vmem:[#allocation5 + $0xdf0] sm:$0xff]
    %v500 = vld [vmem:[#allocation5 + $0xdf8] sm:$0xff]
    %v501 = vld [vmem:[#allocation5 + $0xe00] sm:$0xff]
    %v502 = vld [vmem:[#allocation5 + $0xe08] sm:$0xff]
    %v503 = vld [vmem:[#allocation5 + $0xe10] sm:$0xff]
    %v504 = vld [vmem:[#allocation5 + $0xe18] sm:$0xff]
    %v505 = vld [vmem:[#allocation5 + $0xe20] sm:$0xff]
    %v506 = vld [vmem:[#allocation5 + $0xe28] sm:$0xff]
    %v507 = vld [vmem:[#allocation5 + $0xe30] sm:$0xff]
    %v508 = vld [vmem:[#allocation5 + $0xe38] sm:$0xff]
    %v509 = vld [vmem:[#allocation5 + $0xe40] sm:$0xff]
    %v510 = vld [vmem:[#allocation5 + $0xe48] sm:$0xff]
    %v511 = vld [vmem:[#allocation5 + $0xe50] sm:$0xff]
    %v512 = vld [vmem:[#allocation5 + $0xe58] sm:$0xff]
    %v513 = vld [vmem:[#allocation5 + $0xe60] sm:$0xff]
    %v514 = vld [vmem:[#allocation5 + $0xe68] sm:$0xff]
    %v515 = vld [vmem:[#allocation5 + $0xe70] sm:$0xff]
    %v516 = vld [vmem:[#allocation5 + $0xe78] sm:$0xff]
    %v517 = vld [vmem:[#allocation5 + $0xe80] sm:$0xff]
    %v518 = vld [vmem:[#allocation5 + $0xe88] sm:$0xff]
    %v519 = vld [vmem:[#allocation5 + $0xe90] sm:$0xff]
    %v520 = vld [vmem:[#allocation5 + $0xe98] sm:$0xff]
    %v521 = vld [vmem:[#allocation5 + $0xea0] sm:$0xff]
    %v522 = vld [vmem:[#allocation5 + $0xea8] sm:$0xff]
    %v523 = vld [vmem:[#allocation5 + $0xeb0] sm:$0xff]
    %v524 = vld [vmem:[#allocation5 + $0xeb8] sm:$0xff]
    %v525 = vld [vmem:[#allocation5 + $0xec0] sm:$0xff]
    %v526 = vld [vmem:[#allocation5 + $0xec8] sm:$0xff]
    %v527 = vld [vmem:[#allocation5 + $0xed0] sm:$0xff]
    %v528 = vld [vmem:[#allocation5 + $0xed8] sm:$0xff]
    %v529 = vld [vmem:[#allocation5 + $0xee0] sm:$0xff]
    %v530 = vld [vmem:[#allocation5 + $0xee8] sm:$0xff]
    %v531 = vld [vmem:[#allocation5 + $0xef0] sm:$0xff]
    %v532 = vld [vmem:[#allocation5 + $0xef8] sm:$0xff]
    %v533 = vld [vmem:[#allocation5 + $0xf00] sm:$0xff]
    %v534 = vld [vmem:[#allocation5 + $0xf08] sm:$0xff]
    %v535 = vld [vmem:[#allocation5 + $0xf10] sm:$0xff]
    %v536 = vld [vmem:[#allocation5 + $0xf18] sm:$0xff]
    %v537 = vld [vmem:[#allocation5 + $0xf20] sm:$0xff]
    %v538 = vld [vmem:[#allocation5 + $0xf28] sm:$0xff]
    %v539 = vld [vmem:[#allocation5 + $0xf30] sm:$0xff]
    %v540 = vld [vmem:[#allocation5 + $0xf38] sm:$0xff]
    %v541 = vld [vmem:[#allocation5 + $0xf40] sm:$0xff]
    %v542 = vld [vmem:[#allocation5 + $0xf48] sm:$0xff]
    %v543 = vld [vmem:[#allocation5 + $0xf50] sm:$0xff]
    %v544 = vld [vmem:[#allocation5 + $0xf58] sm:$0xff]
    %v545 = vld [vmem:[#allocation5 + $0xf60] sm:$0xff]
    %v546 = vld [vmem:[#allocation5 + $0xf68] sm:$0xff]
    %v547 = vld [vmem:[#allocation5 + $0xf70] sm:$0xff]
    %v548 = vld [vmem:[#allocation5 + $0xf78] sm:$0xff]
    %v549 = vld [vmem:[#allocation5 + $0xf80] sm:$0xff]
    %v550 = vld [vmem:[#allocation5 + $0xf88] sm:$0xff]
    %v551 = vld [vmem:[#allocation5 + $0xf90] sm:$0xff]
    %v552 = vld [vmem:[#allocation5 + $0xf98] sm:$0xff]
    %v553 = vld [vmem:[#allocation5 + $0xfa0] sm:$0xff]
    %v554 = vld [vmem:[#allocation5 + $0xfa8] sm:$0xff]
    %v555 = vld [vmem:[#allocation5 + $0xfb0] sm:$0xff]
    %v556 = vld [vmem:[#allocation5 + $0xfb8] sm:$0xff]
    %v557 = vld [vmem:[#allocation5 + $0xfc0] sm:$0xff]
    %v558 = vld [vmem:[#allocation5 + $0xfc8] sm:$0xff]
    %v559 = vld [vmem:[#allocation5 + $0xfd0] sm:$0xff]
    %v560 = vld [vmem:[#allocation5 + $0xfd8] sm:$0xff]
    %v561 = vld [vmem:[#allocation5 + $0xfe0] sm:$0xff]
    %v562 = vld [vmem:[#allocation5 + $0xfe8] sm:$0xff]
    %v563 = vld [vmem:[#allocation5 + $0xff0] sm:$0xff]
    %v564 = vld [vmem:[#allocation5 + $0xff8] sm:$0xff]
    %v565 = vld [vmem:[#allocation5 + $0x1000] sm:$0xff]
    %v566 = vld [vmem:[#allocation5 + $0x1008] sm:$0xff]
    %v567 = vld [vmem:[#allocation5 + $0x1010] sm:$0xff]
    %v568 = vld [vmem:[#allocation5 + $0x1018] sm:$0xff]
    %v569 = vld [vmem:[#allocation5 + $0x1020] sm:$0xff]
    %v570 = vld [vmem:[#allocation5 + $0x1028] sm:$0xff]
    %v571 = vld [vmem:[#allocation5 + $0x1030] sm:$0xff]
    %v572 = vld [vmem:[#allocation5 + $0x1038] sm:$0xff]
    %v573 = vld [vmem:[#allocation5 + $0x1040] sm:$0xff]
    %v574 = vld [vmem:[#allocation5 + $0x1048] sm:$0xff]
    %v575 = vld [vmem:[#allocation5 + $0x1050] sm:$0xff]
    %v576 = vld [vmem:[#allocation5 + $0x1058] sm:$0xff]
    %v577 = vld [vmem:[#allocation5 + $0x1060] sm:$0xff]
    %v578 = vld [vmem:[#allocation5 + $0x1068] sm:$0xff]
    %v579 = vld [vmem:[#allocation5 + $0x1070] sm:$0xff]
    %v580 = vld [vmem:[#allocation5 + $0x1078] sm:$0xff]
    %v581 = vld [vmem:[#allocation5 + $0x1080] sm:$0xff]
    %v582 = vld [vmem:[#allocation5 + $0x1088] sm:$0xff]
    %v583 = vld [vmem:[#allocation5 + $0x1090] sm:$0xff]
    %v584 = vld [vmem:[#allocation5 + $0x1098] sm:$0xff]
    %v585 = vld [vmem:[#allocation5 + $0x10a0] sm:$0xff]
    %v586 = vld [vmem:[#allocation5 + $0x10a8] sm:$0xff]
    %v587 = vld [vmem:[#allocation5 + $0x10b0] sm:$0xff]
    %v588 = vld [vmem:[#allocation5 + $0x10b8] sm:$0xff]
    %v589 = vld [vmem:[#allocation5 + $0x10c0] sm:$0xff]
    %v590 = vld [vmem:[#allocation5 + $0x10c8] sm:$0xff]
    %v591 = vld [vmem:[#allocation5 + $0x10d0] sm:$0xff]
    %v592 = vld [vmem:[#allocation5 + $0x10d8] sm:$0xff]
    %v593 = vld [vmem:[#allocation5 + $0x10e0] sm:$0xff]
    %v594 = vld [vmem:[#allocation5 + $0x10e8] sm:$0xff]
    %v595 = vld [vmem:[#allocation5 + $0x10f0] sm:$0xff]
    %v596 = vld [vmem:[#allocation5 + $0x10f8] sm:$0xff]
    %v597 = vld [vmem:[#allocation5 + $0x1100] sm:$0xff]
    %v598 = vld [vmem:[#allocation5 + $0x1108] sm:$0xff]
    %v599 = vld [vmem:[#allocation5 + $0x1110] sm:$0xff]
    %v600 = vld [vmem:[#allocation5 + $0x1118] sm:$0xff]
    %v601 = vld [vmem:[#allocation5 + $0x1120] sm:$0xff]
    %v602 = vld [vmem:[#allocation5 + $0x1128] sm:$0xff]
    %v603 = vld [vmem:[#allocation5 + $0x1130] sm:$0xff]
    %v604 = vld [vmem:[#allocation5 + $0x1138] sm:$0xff]
    %v605 = vld [vmem:[#allocation5 + $0x1140] sm:$0xff]
    %v606 = vld [vmem:[#allocation5 + $0x1148] sm:$0xff]
    %v607 = vld [vmem:[#allocation5 + $0x1150] sm:$0xff]
    %v608 = vld [vmem:[#allocation5 + $0x1158] sm:$0xff]
    %v609 = vld [vmem:[#allocation5 + $0x1160] sm:$0xff]
    %v610 = vld [vmem:[#allocation5 + $0x1168] sm:$0xff]
    %v611 = vld [vmem:[#allocation5 + $0x1170] sm:$0xff]
    %v612 = vld [vmem:[#allocation5 + $0x1178] sm:$0xff]
    %v613 = vld [vmem:[#allocation5 + $0x1180] sm:$0xff]
    %v614 = vld [vmem:[#allocation5 + $0x1188] sm:$0xff]
    %v615 = vld [vmem:[#allocation5 + $0x1190] sm:$0xff]
    %v616 = vld [vmem:[#allocation5 + $0x1198] sm:$0xff]
    %v617 = vld [vmem:[#allocation5 + $0x11a0] sm:$0xff]
    %v618 = vld [vmem:[#allocation5 + $0x11a8] sm:$0xff]
    %v619 = vld [vmem:[#allocation5 + $0x11b0] sm:$0xff]
    %v620 = vld [vmem:[#allocation5 + $0x11b8] sm:$0xff]
    %v621 = vld [vmem:[#allocation5 + $0x11c0] sm:$0xff]
    %v622 = vld [vmem:[#allocation5 + $0x11c8] sm:$0xff]
    %v623 = vld [vmem:[#allocation5 + $0x11d0] sm:$0xff]
    %v624 = vld [vmem:[#allocation5 + $0x11d8] sm:$0xff]
    %v625 = vld [vmem:[#allocation5 + $0x11e0] sm:$0xff]
    %v626 = vld [vmem:[#allocation5 + $0x11e8] sm:$0xff]
    %v627 = vld [vmem:[#allocation5 + $0x11f0] sm:$0xff]
    %v628 = vld [vmem:[#allocation5 + $0x11f8] sm:$0xff]
    %v629 = vld [vmem:[#allocation5 + $0x1200] sm:$0xff]
    %v630 = vld [vmem:[#allocation5 + $0x1208] sm:$0xff]
    %v631 = vld [vmem:[#allocation5 + $0x1210] sm:$0xff]
    %v632 = vld [vmem:[#allocation5 + $0x1218] sm:$0xff]
    %v633 = vld [vmem:[#allocation5 + $0x1220] sm:$0xff]
    %v634 = vld [vmem:[#allocation5 + $0x1228] sm:$0xff]
    %v635 = vld [vmem:[#allocation5 + $0x1230] sm:$0xff]
    %v636 = vld [vmem:[#allocation5 + $0x1238] sm:$0xff]
    %v637 = vld [vmem:[#allocation5 + $0x1240] sm:$0xff]
    %v638 = vld [vmem:[#allocation5 + $0x1248] sm:$0xff]
    %v639 = vld [vmem:[#allocation5 + $0x1250] sm:$0xff]
    %v640 = vld [vmem:[#allocation5 + $0x1258] sm:$0xff]
    %v641 = vld [vmem:[#allocation5 + $0x1260] sm:$0xff]
    %v642 = vld [vmem:[#allocation5 + $0x1268] sm:$0xff]
    %v643 = vld [vmem:[#allocation5 + $0x1270] sm:$0xff]
    %v644 = vld [vmem:[#allocation5 + $0x1278] sm:$0xff]
    %v645 = vld [vmem:[#allocation5 + $0x1280] sm:$0xff]
    %v646 = vld [vmem:[#allocation5 + $0x1288] sm:$0xff]
    %v647 = vld [vmem:[#allocation5 + $0x1290] sm:$0xff]
    %v648 = vld [vmem:[#allocation5 + $0x1298] sm:$0xff]
    %v649 = vld [vmem:[#allocation5 + $0x12a0] sm:$0xff]
    %v650 = vld [vmem:[#allocation5 + $0x12a8] sm:$0xff]
    %v651 = vld [vmem:[#allocation5 + $0x12b0] sm:$0xff]
    %v652 = vld [vmem:[#allocation5 + $0x12b8] sm:$0xff]
    %v653 = vld [vmem:[#allocation5 + $0x12c0] sm:$0xff]
    %v654 = vld [vmem:[#allocation5 + $0x12c8] sm:$0xff]
    %v655 = vld [vmem:[#allocation5 + $0x12d0] sm:$0xff]
    %v656 = vld [vmem:[#allocation5 + $0x12d8] sm:$0xff]
    %v657 = vld [vmem:[#allocation5 + $0x12e0] sm:$0xff]
    %v658 = vld [vmem:[#allocation5 + $0x12e8] sm:$0xff]
    %v659 = vld [vmem:[#allocation5 + $0x12f0] sm:$0xff]
    %v660 = vld [vmem:[#allocation5 + $0x12f8] sm:$0xff]
    %v661 = vld [vmem:[#allocation5 + $0x1300] sm:$0xff]
    %v662 = vld [vmem:[#allocation5 + $0x1308] sm:$0xff]
    %v663 = vld [vmem:[#allocation5 + $0x1310] sm:$0xff]
    %v664 = vld [vmem:[#allocation5 + $0x1318] sm:$0xff]
    %v665 = vld [vmem:[#allocation5 + $0x1320] sm:$0xff]
    %v666 = vld [vmem:[#allocation5 + $0x1328] sm:$0xff]
    %v667 = vld [vmem:[#allocation5 + $0x1330] sm:$0xff]
    %v668 = vld [vmem:[#allocation5 + $0x1338] sm:$0xff]
    %v669 = vld [vmem:[#allocation5 + $0x1340] sm:$0xff]
    %v670 = vld [vmem:[#allocation5 + $0x1348] sm:$0xff]
    %v671 = vld [vmem:[#allocation5 + $0x1350] sm:$0xff]
    %v672 = vld [vmem:[#allocation5 + $0x1358] sm:$0xff]
    %v673 = vld [vmem:[#allocation5 + $0x1360] sm:$0xff]
    %v674 = vld [vmem:[#allocation5 + $0x1368] sm:$0xff]
    %v675 = vld [vmem:[#allocation5 + $0x1370] sm:$0xff]
    %v676 = vld [vmem:[#allocation5 + $0x1378] sm:$0xff]
    %v677 = vld [vmem:[#allocation5 + $0x1380] sm:$0xff]
    %v678 = vld [vmem:[#allocation5 + $0x1388] sm:$0xff]
    %v679 = vld [vmem:[#allocation5 + $0x1390] sm:$0xff]
    %v680 = vld [vmem:[#allocation5 + $0x1398] sm:$0xff]
    %v681 = vld [vmem:[#allocation5 + $0x13a0] sm:$0xff]
    %v682 = vld [vmem:[#allocation5 + $0x13a8] sm:$0xff]
    %v683 = vld [vmem:[#allocation5 + $0x13b0] sm:$0xff]
    %v684 = vld [vmem:[#allocation5 + $0x13b8] sm:$0xff]
    %v685 = vld [vmem:[#allocation5 + $0x13c0] sm:$0xff]
    %v686 = vld [vmem:[#allocation5 + $0x13c8] sm:$0xff]
    %v687 = vld [vmem:[#allocation5 + $0x13d0] sm:$0xff]
    %v688 = vld [vmem:[#allocation5 + $0x13d8] sm:$0xff]
    %v689 = vld [vmem:[#allocation5 + $0x13e0] sm:$0xff]
    %v690 = vld [vmem:[#allocation5 + $0x13e8] sm:$0xff]
    %v691 = vld [vmem:[#allocation5 + $0x13f0] sm:$0xff]
    %v692 = vld [vmem:[#allocation5 + $0x13f8] sm:$0xff]
    %v693 = vld [vmem:[#allocation7] sm:$0xff]
    %v695 = vlaneseq
    %v696 = vshrl.u32 %v695, 7
    %v697 = vsub.s32 0, %v696
    %v698 = vrot.slane %v52, %v697
    %v699 = vlaneseq
    %v700 = vshrl.u32 %v699, 7
    %v701 = vsub.s32 1, %v700
    %v702 = vrot.slane %v52, %v701
    %v703 = vlaneseq
    %v704 = vshrl.u32 %v703, 7
    %v705 = vsub.s32 2, %v704
    %v706 = vrot.slane %v52, %v705
    %v707 = vlaneseq
    %v708 = vshrl.u32 %v707, 7
    %v709 = vsub.s32 3, %v708
    %v710 = vrot.slane %v52, %v709
    %v711 = vlaneseq
    %v712 = vshrl.u32 %v711, 7
    %v713 = vsub.s32 4, %v712
    %v714 = vrot.slane %v52, %v713
    %v721 = vlaneseq
    %v722 = vshrl.u32 %v721, 7
    %v723 = vsub.s32 0, %v722
    %v724 = vrot.slane %v693, %v723
    %v725 = vlaneseq
    %v726 = vshrl.u32 %v725, 7
    %v727 = vsub.s32 1, %v726
    %v728 = vrot.slane %v693, %v727
    %v729 = vlaneseq
    %v730 = vshrl.u32 %v729, 7
    %v731 = vsub.s32 2, %v730
    %v732 = vrot.slane %v693, %v731
    %v733 = vlaneseq
    %v734 = vshrl.u32 %v733, 7
    %v735 = vsub.s32 3, %v734
    %v736 = vrot.slane %v693, %v735
    %v737 = vlaneseq
    %v738 = vshrl.u32 %v737, 7
    %v739 = vsub.s32 4, %v738
    %v740 = vrot.slane %v693, %v739
    %v741 = vlaneseq
    %v742 = vshrl.u32 %v741, 7
    %v743 = vsub.s32 5, %v742
    %v744 = vrot.slane %v693, %v743
    %v745 = vlaneseq
    %v746 = vshrl.u32 %v745, 7
    %v747 = vsub.s32 6, %v746
    %v748 = vrot.slane %v693, %v747
    %v749 = vlaneseq
    %v750 = vshrl.u32 %v749, 7
    %v751 = vsub.s32 7, %v750
    %v752 = vrot.slane %v693, %v751
    %761 = vmatprep.subr.mxu0 %v54
    %762 = vmatpush1.msra.mxu0 %v53
    %763 = vmatprep.subr.mxu0 %v62
    %764 = vmatpush1.msra.mxu0 %v61
    %765 = vmatprep.subr.mxu0 %v70
    %766 = vmatpush1.msra.mxu0 %v69
    %767 = vmatprep.subr.mxu0 %v78
    %768 = vmatpush1.msra.mxu0 %v77
    %769 = vmatprep.subr.mxu0 %v86
    %770 = vmatpush1.msra.mxu0 %v85
    %771 = vmatprep.subr.mxu0 %v94
    %772 = vmatpush1.msra.mxu0 %v93
    %773 = vmatprep.subr.mxu0 %v102
    %774 = vmatpush1.msra.mxu0 %v101
    %775 = vmatprep.subr.mxu0 %v110
    %776 = vmatpush1.msra.mxu0 %v109
    %777 = vmatprep.subr.mxu0 %v118
    %778 = vmatpush1.msra.mxu0 %v117
    %779 = vmatprep.subr.mxu0 %v126
    %780 = vmatpush1.msra.mxu0 %v125
    %781 = vmatprep.subr.mxu0 %v134
    %782 = vmatpush1.msra.mxu0 %v133
    %783 = vmatprep.subr.mxu0 %v142
    %784 = vmatpush1.msra.mxu0 %v141
    %785 = vmatprep.subr.mxu0 %v150
    %786 = vmatpush1.msra.mxu0 %v149
    %787 = vmatprep.subr.mxu0 %v158
    %788 = vmatpush1.msra.mxu0 %v157
    %789 = vmatprep.subr.mxu0 %v166
    %790 = vmatpush1.msra.mxu0 %v165
    %791 = vmatprep.subr.mxu0 %v174
    %792 = vmatpush1.msra.mxu0 %v173
    %793 = vmatprep.subr.mxu0 %v182
    %794 = vmatpush1.msra.mxu0 %v181
    %795 = vmatprep.subr.mxu0 %v190
    %796 = vmatpush1.msra.mxu0 %v189
    %797 = vmatprep.subr.mxu0 %v198
    %798 = vmatpush1.msra.mxu0 %v197
    %799 = vmatprep.subr.mxu0 %v206
    %800 = vmatpush1.msra.mxu0 %v205
    %801 = vmatprep.subr.mxu0 %v214
    %802 = vmatpush1.msra.mxu0 %v213
    %803 = vmatprep.subr.mxu0 %v222
    %804 = vmatpush1.msra.mxu0 %v221
    %805 = vmatprep.subr.mxu0 %v230
    %806 = vmatpush1.msra.mxu0 %v229
    %807 = vmatprep.subr.mxu0 %v238
    %808 = vmatpush1.msra.mxu0 %v237
    %809 = vmatprep.subr.mxu0 %v246
    %810 = vmatpush1.msra.mxu0 %v245
    %811 = vmatprep.subr.mxu0 %v254
    %812 = vmatpush1.msra.mxu0 %v253
    %813 = vmatprep.subr.mxu0 %v262
    %814 = vmatpush1.msra.mxu0 %v261
    %815 = vmatprep.subr.mxu0 %v270
    %816 = vmatpush1.msra.mxu0 %v269
    %817 = vmatprep.subr.mxu0 %v278
    %818 = vmatpush1.msra.mxu0 %v277
    %819 = vmatprep.subr.mxu0 %v286
    %820 = vmatpush1.msra.mxu0 %v285
    %821 = vmatprep.subr.mxu0 %v294
    %822 = vmatpush1.msra.mxu0 %v293
    %823 = vmatprep.subr.mxu0 %v302
    %824 = vmatpush1.msra.mxu0 %v301
    %825 = vmatprep.mubr.f32.mxu0 %v702
    %826 = vmatmul.mubr.f32.gmra.mrb[0].mxu0 %v698
    %v827 = vpop.f32.mrb[0].mxu0
    %v828 = vadd.f32 %v724, %v827
    %v829 = vpop.f32.mrb[0].mxu0
    %v830 = vadd.f32 %v728, %v829
    %831 = vdwg.mxu0
    %832 = vmatprep.subr.mxu0 %v310
    %833 = vmatpush1.msra.mxu0 %v309
    %834 = vmatprep.subr.mxu0 %v318
    %835 = vmatpush1.msra.mxu0 %v317
    %836 = vmatprep.subr.mxu0 %v326
    %837 = vmatpush1.msra.mxu0 %v325
    %838 = vmatprep.subr.mxu0 %v334
    %839 = vmatpush1.msra.mxu0 %v333
    %840 = vmatprep.subr.mxu0 %v342
    %841 = vmatpush1.msra.mxu0 %v341
    %842 = vmatprep.subr.mxu0 %v350
    %843 = vmatpush1.msra.mxu0 %v349
    %844 = vmatprep.subr.mxu0 %v358
    %845 = vmatpush1.msra.mxu0 %v357
    %846 = vmatprep.subr.mxu0 %v366
    %847 = vmatpush1.msra.mxu0 %v365
    %848 = vmatprep.subr.mxu0 %v374
    %849 = vmatpush1.msra.mxu0 %v373
    %850 = vmatprep.subr.mxu0 %v382
    %851 = vmatpush1.msra.mxu0 %v381
    %852 = vmatprep.subr.mxu0 %v390
    %853 = vmatpush1.msra.mxu0 %v389
    %854 = vmatprep.subr.mxu0 %v398
    %855 = vmatpush1.msra.mxu0 %v397
    %856 = vmatprep.subr.mxu0 %v406
    %857 = vmatpush1.msra.mxu0 %v405
    %858 = vmatprep.subr.mxu0 %v414
    %859 = vmatpush1.msra.mxu0 %v413
    %860 = vmatprep.subr.mxu0 %v422
    %861 = vmatpush1.msra.mxu0 %v421
    %862 = vmatprep.subr.mxu0 %v430
    %863 = vmatpush1.msra.mxu0 %v429
    %864 = vmatprep.subr.mxu0 %v438
    %865 = vmatpush1.msra.mxu0 %v437
    %866 = vmatprep.subr.mxu0 %v446
    %867 = vmatpush1.msra.mxu0 %v445
    %868 = vmatprep.subr.mxu0 %v454
    %869 = vmatpush1.msra.mxu0 %v453
    %870 = vmatprep.subr.mxu0 %v462
    %871 = vmatpush1.msra.mxu0 %v461
    %872 = vmatprep.subr.mxu0 %v470
    %873 = vmatpush1.msra.mxu0 %v469
    %874 = vmatprep.subr.mxu0 %v478
    %875 = vmatpush1.msra.mxu0 %v477
    %876 = vmatprep.subr.mxu0 %v486
    %877 = vmatpush1.msra.mxu0 %v485
    %878 = vmatprep.subr.mxu0 %v494
    %879 = vmatpush1.msra.mxu0 %v493
    %880 = vmatprep.subr.mxu0 %v502
    %881 = vmatpush1.msra.mxu0 %v501
    %882 = vmatprep.subr.mxu0 %v510
    %883 = vmatpush1.msra.mxu0 %v509
    %884 = vmatprep.subr.mxu0 %v518
    %885 = vmatpush1.msra.mxu0 %v517
    %886 = vmatprep.subr.mxu0 %v526
    %887 = vmatpush1.msra.mxu0 %v525
    %888 = vmatprep.subr.mxu0 %v534
    %889 = vmatpush1.msra.mxu0 %v533
    %890 = vmatprep.subr.mxu0 %v542
    %891 = vmatpush1.msra.mxu0 %v541
    %892 = vmatprep.subr.mxu0 %v550
    %893 = vmatpush1.msra.mxu0 %v549
    %894 = vmatprep.subr.mxu0 %v558
    %895 = vmatpush1.msra.mxu0 %v557
    %896 = vmatprep.mubr.f32.mxu0 %v710
    %897 = vmatmul.mubr.f32.gmra.mrb[0].mxu0 %v706
    %v898 = vpop.f32.mrb[0].mxu0
    %v899 = vadd.f32 %v828, %v898
    %v900 = vpop.f32.mrb[0].mxu0
    %v901 = vadd.f32 %v830, %v900
    %902 = vdwg.mxu0
    %903 = vmatprep.subr.mxu0 %v566
    %904 = vmatpush1.msra.mxu0 %v565
    %905 = vmatprep.subr.mxu0 %v574
    %906 = vmatpush1.msra.mxu0 %v573
    %907 = vmatprep.subr.mxu0 %v582
    %908 = vmatpush1.msra.mxu0 %v581
    %909 = vmatprep.subr.mxu0 %v590
    %910 = vmatpush1.msra.mxu0 %v589
    %911 = vmatprep.subr.mxu0 %v598
    %912 = vmatpush1.msra.mxu0 %v597
    %913 = vmatprep.subr.mxu0 %v606
    %914 = vmatpush1.msra.mxu0 %v605
    %915 = vmatprep.subr.mxu0 %v614
    %916 = vmatpush1.msra.mxu0 %v613
    %917 = vmatprep.subr.mxu0 %v622
    %918 = vmatpush1.msra.mxu0 %v621
    %919 = vmatprep.subr.mxu0 %v630
    %920 = vmatpush1.msra.mxu0 %v629
    %921 = vmatprep.subr.mxu0 %v638
    %922 = vmatpush1.msra.mxu0 %v637
    %923 = vmatprep.subr.mxu0 %v646
    %924 = vmatpush1.msra.mxu0 %v645
    %925 = vmatprep.subr.mxu0 %v654
    %926 = vmatpush1.msra.mxu0 %v653
    %927 = vmatprep.subr.mxu0 %v662
    %928 = vmatpush1.msra.mxu0 %v661
    %929 = vmatprep.subr.mxu0 %v670
    %930 = vmatpush1.msra.mxu0 %v669
    %931 = vmatprep.subr.mxu0 %v678
    %932 = vmatpush1.msra.mxu0 %v677
    %933 = vmatprep.subr.mxu0 %v686
    %934 = vmatpush1.msra.mxu0 %v685
    %935 = vmatprep.subr.mxu0 0.0
    %936 = vmatpush1.msra.mxu0 0.0
    %937 = vmatprep.subr.mxu0 0.0
    %938 = vmatpush1.msra.mxu0 0.0
    %939 = vmatprep.subr.mxu0 0.0
    %940 = vmatpush1.msra.mxu0 0.0
    %941 = vmatprep.subr.mxu0 0.0
    %942 = vmatpush1.msra.mxu0 0.0
    %943 = vmatprep.subr.mxu0 0.0
    %944 = vmatpush1.msra.mxu0 0.0
    %945 = vmatprep.subr.mxu0 0.0
    %946 = vmatpush1.msra.mxu0 0.0
    %947 = vmatprep.subr.mxu0 0.0
    %948 = vmatpush1.msra.mxu0 0.0
    %949 = vmatprep.subr.mxu0 0.0
    %950 = vmatpush1.msra.mxu0 0.0
    %951 = vmatprep.subr.mxu0 0.0
    %952 = vmatpush1.msra.mxu0 0.0
    %953 = vmatprep.subr.mxu0 0.0
    %954 = vmatpush1.msra.mxu0 0.0
    %955 = vmatprep.subr.mxu0 0.0
    %956 = vmatpush1.msra.mxu0 0.0
    %957 = vmatprep.subr.mxu0 0.0
    %958 = vmatpush1.msra.mxu0 0.0
    %959 = vmatprep.subr.mxu0 0.0
    %960 = vmatpush1.msra.mxu0 0.0
    %961 = vmatprep.subr.mxu0 0.0
    %962 = vmatpush1.msra.mxu0 0.0
    %963 = vmatprep.subr.mxu0 0.0
    %964 = vmatpush1.msra.mxu0 0.0
    %965 = vmatprep.subr.mxu0 0.0
    %966 = vmatpush1.msra.mxu0 0.0
    %967 = vmatprep.mubr.f32.mxu0 0.0
    %968 = vmatmul.mubr.f32.gmra.mrb[0].mxu0 %v714
    %v969 = vpop.f32.mrb[0].mxu0
    %v970 = vadd.f32 %v899, %v969
    %v971 = vpop.f32.mrb[0].mxu0
    %v972 = vadd.f32 %v901, %v971
    %973 = vdwg.mxu0
    %974 = vmatprep.subr.mxu0 %v56
    %975 = vmatpush1.msra.mxu0 %v55
    %976 = vmatprep.subr.mxu0 %v64
    %977 = vmatpush1.msra.mxu0 %v63
    %978 = vmatprep.subr.mxu0 %v72
    %979 = vmatpush1.msra.mxu0 %v71
    %980 = vmatprep.subr.mxu0 %v80
    %981 = vmatpush1.msra.mxu0 %v79
    %982 = vmatprep.subr.mxu0 %v88
    %983 = vmatpush1.msra.mxu0 %v87
    %984 = vmatprep.subr.mxu0 %v96
    %985 = vmatpush1.msra.mxu0 %v95
    %986 = vmatprep.subr.mxu0 %v104
    %987 = vmatpush1.msra.mxu0 %v103
    %988 = vmatprep.subr.mxu0 %v112
    %989 = vmatpush1.msra.mxu0 %v111
    %990 = vmatprep.subr.mxu0 %v120
    %991 = vmatpush1.msra.mxu0 %v119
    %992 = vmatprep.subr.mxu0 %v128
    %993 = vmatpush1.msra.mxu0 %v127
    %994 = vmatprep.subr.mxu0 %v136
    %995 = vmatpush1.msra.mxu0 %v135
    %996 = vmatprep.subr.mxu0 %v144
    %997 = vmatpush1.msra.mxu0 %v143
    %998 = vmatprep.subr.mxu0 %v152
    %999 = vmatpush1.msra.mxu0 %v151
    %1000 = vmatprep.subr.mxu0 %v160
    %1001 = vmatpush1.msra.mxu0 %v159
    %1002 = vmatprep.subr.mxu0 %v168
    %1003 = vmatpush1.msra.mxu0 %v167
    %1004 = vmatprep.subr.mxu0 %v176
    %1005 = vmatpush1.msra.mxu0 %v175
    %1006 = vmatprep.subr.mxu0 %v184
    %1007 = vmatpush1.msra.mxu0 %v183
    %1008 = vmatprep.subr.mxu0 %v192
    %1009 = vmatpush1.msra.mxu0 %v191
    %1010 = vmatprep.subr.mxu0 %v200
    %1011 = vmatpush1.msra.mxu0 %v199
    %1012 = vmatprep.subr.mxu0 %v208
    %1013 = vmatpush1.msra.mxu0 %v207
    %1014 = vmatprep.subr.mxu0 %v216
    %1015 = vmatpush1.msra.mxu0 %v215
    %1016 = vmatprep.subr.mxu0 %v224
    %1017 = vmatpush1.msra.mxu0 %v223
    %1018 = vmatprep.subr.mxu0 %v232
    %1019 = vmatpush1.msra.mxu0 %v231
    %1020 = vmatprep.subr.mxu0 %v240
    %1021 = vmatpush1.msra.mxu0 %v239
    %1022 = vmatprep.subr.mxu0 %v248
    %1023 = vmatpush1.msra.mxu0 %v247
    %1024 = vmatprep.subr.mxu0 %v256
    %1025 = vmatpush1.msra.mxu0 %v255
    %1026 = vmatprep.subr.mxu0 %v264
    %1027 = vmatpush1.msra.mxu0 %v263
    %1028 = vmatprep.subr.mxu0 %v272
    %1029 = vmatpush1.msra.mxu0 %v271
    %1030 = vmatprep.subr.mxu0 %v280
    %1031 = vmatpush1.msra.mxu0 %v279
    %1032 = vmatprep.subr.mxu0 %v288
    %1033 = vmatpush1.msra.mxu0 %v287
    %1034 = vmatprep.subr.mxu0 %v296
    %1035 = vmatpush1.msra.mxu0 %v295
    %1036 = vmatprep.subr.mxu0 %v304
    %1037 = vmatpush1.msra.mxu0 %v303
    %1038 = vmatprep.mubr.f32.mxu0 %v702
    %1039 = vmatmul.mubr.f32.gmra.mrb[0].mxu0 %v698
    %v1040 = vpop.f32.mrb[0].mxu0
    %v1041 = vadd.f32 %v732, %v1040
    %v1042 = vpop.f32.mrb[0].mxu0
    %v1043 = vadd.f32 %v736, %v1042
    %1044 = vdwg.mxu0
    %1045 = vmatprep.subr.mxu0 %v312
    %1046 = vmatpush1.msra.mxu0 %v311
    %1047 = vmatprep.subr.mxu0 %v320
    %1048 = vmatpush1.msra.mxu0 %v319
    %1049 = vmatprep.subr.mxu0 %v328
    %1050 = vmatpush1.msra.mxu0 %v327
    %1051 = vmatprep.subr.mxu0 %v336
    %1052 = vmatpush1.msra.mxu0 %v335
    %1053 = vmatprep.subr.mxu0 %v344
    %1054 = vmatpush1.msra.mxu0 %v343
    %1055 = vmatprep.subr.mxu0 %v352
    %1056 = vmatpush1.msra.mxu0 %v351
    %1057 = vmatprep.subr.mxu0 %v360
    %1058 = vmatpush1.msra.mxu0 %v359
    %1059 = vmatprep.subr.mxu0 %v368
    %1060 = vmatpush1.msra.mxu0 %v367
    %1061 = vmatprep.subr.mxu0 %v376
    %1062 = vmatpush1.msra.mxu0 %v375
    %1063 = vmatprep.subr.mxu0 %v384
    %1064 = vmatpush1.msra.mxu0 %v383
    %1065 = vmatprep.subr.mxu0 %v392
    %1066 = vmatpush1.msra.mxu0 %v391
    %1067 = vmatprep.subr.mxu0 %v400
    %1068 = vmatpush1.msra.mxu0 %v399
    %1069 = vmatprep.subr.mxu0 %v408
    %1070 = vmatpush1.msra.mxu0 %v407
    %1071 = vmatprep.subr.mxu0 %v416
    %1072 = vmatpush1.msra.mxu0 %v415
    %1073 = vmatprep.subr.mxu0 %v424
    %1074 = vmatpush1.msra.mxu0 %v423
    %1075 = vmatprep.subr.mxu0 %v432
    %1076 = vmatpush1.msra.mxu0 %v431
    %1077 = vmatprep.subr.mxu0 %v440
    %1078 = vmatpush1.msra.mxu0 %v439
    %1079 = vmatprep.subr.mxu0 %v448
    %1080 = vmatpush1.msra.mxu0 %v447
    %1081 = vmatprep.subr.mxu0 %v456
    %1082 = vmatpush1.msra.mxu0 %v455
    %1083 = vmatprep.subr.mxu0 %v464
    %1084 = vmatpush1.msra.mxu0 %v463
    %1085 = vmatprep.subr.mxu0 %v472
    %1086 = vmatpush1.msra.mxu0 %v471
    %1087 = vmatprep.subr.mxu0 %v480
    %1088 = vmatpush1.msra.mxu0 %v479
    %1089 = vmatprep.subr.mxu0 %v488
    %1090 = vmatpush1.msra.mxu0 %v487
    %1091 = vmatprep.subr.mxu0 %v496
    %1092 = vmatpush1.msra.mxu0 %v495
    %1093 = vmatprep.subr.mxu0 %v504
    %1094 = vmatpush1.msra.mxu0 %v503
    %1095 = vmatprep.subr.mxu0 %v512
    %1096 = vmatpush1.msra.mxu0 %v511
    %1097 = vmatprep.subr.mxu0 %v520
    %1098 = vmatpush1.msra.mxu0 %v519
    %1099 = vmatprep.subr.mxu0 %v528
    %1100 = vmatpush1.msra.mxu0 %v527
    %1101 = vmatprep.subr.mxu0 %v536
    %1102 = vmatpush1.msra.mxu0 %v535
    %1103 = vmatprep.subr.mxu0 %v544
    %1104 = vmatpush1.msra.mxu0 %v543
    %1105 = vmatprep.subr.mxu0 %v552
    %1106 = vmatpush1.msra.mxu0 %v551
    %1107 = vmatprep.subr.mxu0 %v560
    %1108 = vmatpush1.msra.mxu0 %v559
    %1109 = vmatprep.mubr.f32.mxu0 %v710
    %1110 = vmatmul.mubr.f32.gmra.mrb[0].mxu0 %v706
    %v1111 = vpop.f32.mrb[0].mxu0
    %v1112 = vadd.f32 %v1041, %v1111
    %v1113 = vpop.f32.mrb[0].mxu0
    %v1114 = vadd.f32 %v1043, %v1113
    %1115 = vdwg.mxu0
    %1116 = vmatprep.subr.mxu0 %v568
    %1117 = vmatpush1.msra.mxu0 %v567
    %1118 = vmatprep.subr.mxu0 %v576
    %1119 = vmatpush1.msra.mxu0 %v575
    %1120 = vmatprep.subr.mxu0 %v584
    %1121 = vmatpush1.msra.mxu0 %v583
    %1122 = vmatprep.subr.mxu0 %v592
    %1123 = vmatpush1.msra.mxu0 %v591
    %1124 = vmatprep.subr.mxu0 %v600
    %1125 = vmatpush1.msra.mxu0 %v599
    %1126 = vmatprep.subr.mxu0 %v608
    %1127 = vmatpush1.msra.mxu0 %v607
    %1128 = vmatprep.subr.mxu0 %v616
    %1129 = vmatpush1.msra.mxu0 %v615
    %1130 = vmatprep.subr.mxu0 %v624
    %1131 = vmatpush1.msra.mxu0 %v623
    %1132 = vmatprep.subr.mxu0 %v632
    %1133 = vmatpush1.msra.mxu0 %v631
    %1134 = vmatprep.subr.mxu0 %v640
    %1135 = vmatpush1.msra.mxu0 %v639
    %1136 = vmatprep.subr.mxu0 %v648
    %1137 = vmatpush1.msra.mxu0 %v647
    %1138 = vmatprep.subr.mxu0 %v656
    %1139 = vmatpush1.msra.mxu0 %v655
    %1140 = vmatprep.subr.mxu0 %v664
    %1141 = vmatpush1.msra.mxu0 %v663
    %1142 = vmatprep.subr.mxu0 %v672
    %1143 = vmatpush1.msra.mxu0 %v671
    %1144 = vmatprep.subr.mxu0 %v680
    %1145 = vmatpush1.msra.mxu0 %v679
    %1146 = vmatprep.subr.mxu0 %v688
    %1147 = vmatpush1.msra.mxu0 %v687
    %1148 = vmatprep.subr.mxu0 0.0
    %1149 = vmatpush1.msra.mxu0 0.0
    %1150 = vmatprep.subr.mxu0 0.0
    %1151 = vmatpush1.msra.mxu0 0.0
    %1152 = vmatprep.subr.mxu0 0.0
    %1153 = vmatpush1.msra.mxu0 0.0
    %1154 = vmatprep.subr.mxu0 0.0
    %1155 = vmatpush1.msra.mxu0 0.0
    %1156 = vmatprep.subr.mxu0 0.0
    %1157 = vmatpush1.msra.mxu0 0.0
    %1158 = vmatprep.subr.mxu0 0.0
    %1159 = vmatpush1.msra.mxu0 0.0
    %1160 = vmatprep.subr.mxu0 0.0
    %1161 = vmatpush1.msra.mxu0 0.0
    %1162 = vmatprep.subr.mxu0 0.0
    %1163 = vmatpush1.msra.mxu0 0.0
    %1164 = vmatprep.subr.mxu0 0.0
    %1165 = vmatpush1.msra.mxu0 0.0
    %1166 = vmatprep.subr.mxu0 0.0
    %1167 = vmatpush1.msra.mxu0 0.0
    %1168 = vmatprep.subr.mxu0 0.0
    %1169 = vmatpush1.msra.mxu0 0.0
    %1170 = vmatprep.subr.mxu0 0.0
    %1171 = vmatpush1.msra.mxu0 0.0
    %1172 = vmatprep.subr.mxu0 0.0
    %1173 = vmatpush1.msra.mxu0 0.0
    %1174 = vmatprep.subr.mxu0 0.0
    %1175 = vmatpush1.msra.mxu0 0.0
    %1176 = vmatprep.subr.mxu0 0.0
    %1177 = vmatpush1.msra.mxu0 0.0
    %1178 = vmatprep.subr.mxu0 0.0
    %1179 = vmatpush1.msra.mxu0 0.0
    %1180 = vmatprep.mubr.f32.mxu0 0.0
    %1181 = vmatmul.mubr.f32.gmra.mrb[0].mxu0 %v714
    %v1182 = vpop.f32.mrb[0].mxu0
    %v1183 = vadd.f32 %v1112, %v1182
    %v1184 = vpop.f32.mrb[0].mxu0
    %v1185 = vadd.f32 %v1114, %v1184
    %1186 = vdwg.mxu0
    %1187 = vmatprep.subr.mxu0 %v58
    %1188 = vmatpush1.msra.mxu0 %v57
    %1189 = vmatprep.subr.mxu0 %v66
    %1190 = vmatpush1.msra.mxu0 %v65
    %1191 = vmatprep.subr.mxu0 %v74
    %1192 = vmatpush1.msra.mxu0 %v73
    %1193 = vmatprep.subr.mxu0 %v82
    %1194 = vmatpush1.msra.mxu0 %v81
    %1195 = vmatprep.subr.mxu0 %v90
    %1196 = vmatpush1.msra.mxu0 %v89
    %1197 = vmatprep.subr.mxu0 %v98
    %1198 = vmatpush1.msra.mxu0 %v97
    %1199 = vmatprep.subr.mxu0 %v106
    %1200 = vmatpush1.msra.mxu0 %v105
    %1201 = vmatprep.subr.mxu0 %v114
    %1202 = vmatpush1.msra.mxu0 %v113
    %1203 = vmatprep.subr.mxu0 %v122
    %1204 = vmatpush1.msra.mxu0 %v121
    %1205 = vmatprep.subr.mxu0 %v130
    %1206 = vmatpush1.msra.mxu0 %v129
    %1207 = vmatprep.subr.mxu0 %v138
    %1208 = vmatpush1.msra.mxu0 %v137
    %1209 = vmatprep.subr.mxu0 %v146
    %1210 = vmatpush1.msra.mxu0 %v145
    %1211 = vmatprep.subr.mxu0 %v154
    %1212 = vmatpush1.msra.mxu0 %v153
    %1213 = vmatprep.subr.mxu0 %v162
    %1214 = vmatpush1.msra.mxu0 %v161
    %1215 = vmatprep.subr.mxu0 %v170
    %1216 = vmatpush1.msra.mxu0 %v169
    %1217 = vmatprep.subr.mxu0 %v178
    %1218 = vmatpush1.msra.mxu0 %v177
    %1219 = vmatprep.subr.mxu0 %v186
    %1220 = vmatpush1.msra.mxu0 %v185
    %1221 = vmatprep.subr.mxu0 %v194
    %1222 = vmatpush1.msra.mxu0 %v193
    %1223 = vmatprep.subr.mxu0 %v202
    %1224 = vmatpush1.msra.mxu0 %v201
    %1225 = vmatprep.subr.mxu0 %v210
    %1226 = vmatpush1.msra.mxu0 %v209
    %1227 = vmatprep.subr.mxu0 %v218
    %1228 = vmatpush1.msra.mxu0 %v217
    %1229 = vmatprep.subr.mxu0 %v226
    %1230 = vmatpush1.msra.mxu0 %v225
    %1231 = vmatprep.subr.mxu0 %v234
    %1232 = vmatpush1.msra.mxu0 %v233
    %1233 = vmatprep.subr.mxu0 %v242
    %1234 = vmatpush1.msra.mxu0 %v241
    %1235 = vmatprep.subr.mxu0 %v250
    %1236 = vmatpush1.msra.mxu0 %v249
    %1237 = vmatprep.subr.mxu0 %v258
    %1238 = vmatpush1.msra.mxu0 %v257
    %1239 = vmatprep.subr.mxu0 %v266
    %1240 = vmatpush1.msra.mxu0 %v265
    %1241 = vmatprep.subr.mxu0 %v274
    %1242 = vmatpush1.msra.mxu0 %v273
    %1243 = vmatprep.subr.mxu0 %v282
    %1244 = vmatpush1.msra.mxu0 %v281
    %1245 = vmatprep.subr.mxu0 %v290
    %1246 = vmatpush1.msra.mxu0 %v289
    %1247 = vmatprep.subr.mxu0 %v298
    %1248 = vmatpush1.msra.mxu0 %v297
    %1249 = vmatprep.subr.mxu0 %v306
    %1250 = vmatpush1.msra.mxu0 %v305
    %1251 = vmatprep.mubr.f32.mxu0 %v702
    %1252 = vmatmul.mubr.f32.gmra.mrb[0].mxu0 %v698
    %v1253 = vpop.f32.mrb[0].mxu0
    %v1254 = vadd.f32 %v740, %v1253
    %v1255 = vpop.f32.mrb[0].mxu0
    %v1256 = vadd.f32 %v744, %v1255
    %1257 = vdwg.mxu0
    %1258 = vmatprep.subr.mxu0 %v314
    %1259 = vmatpush1.msra.mxu0 %v313
    %1260 = vmatprep.subr.mxu0 %v322
    %1261 = vmatpush1.msra.mxu0 %v321
    %1262 = vmatprep.subr.mxu0 %v330
    %1263 = vmatpush1.msra.mxu0 %v329
    %1264 = vmatprep.subr.mxu0 %v338
    %1265 = vmatpush1.msra.mxu0 %v337
    %1266 = vmatprep.subr.mxu0 %v346
    %1267 = vmatpush1.msra.mxu0 %v345
    %1268 = vmatprep.subr.mxu0 %v354
    %1269 = vmatpush1.msra.mxu0 %v353
    %1270 = vmatprep.subr.mxu0 %v362
    %1271 = vmatpush1.msra.mxu0 %v361
    %1272 = vmatprep.subr.mxu0 %v370
    %1273 = vmatpush1.msra.mxu0 %v369
    %1274 = vmatprep.subr.mxu0 %v378
    %1275 = vmatpush1.msra.mxu0 %v377
    %1276 = vmatprep.subr.mxu0 %v386
    %1277 = vmatpush1.msra.mxu0 %v385
    %1278 = vmatprep.subr.mxu0 %v394
    %1279 = vmatpush1.msra.mxu0 %v393
    %1280 = vmatprep.subr.mxu0 %v402
    %1281 = vmatpush1.msra.mxu0 %v401
    %1282 = vmatprep.subr.mxu0 %v410
    %1283 = vmatpush1.msra.mxu0 %v409
    %1284 = vmatprep.subr.mxu0 %v418
    %1285 = vmatpush1.msra.mxu0 %v417
    %1286 = vmatprep.subr.mxu0 %v426
    %1287 = vmatpush1.msra.mxu0 %v425
    %1288 = vmatprep.subr.mxu0 %v434
    %1289 = vmatpush1.msra.mxu0 %v433
    %1290 = vmatprep.subr.mxu0 %v442
    %1291 = vmatpush1.msra.mxu0 %v441
    %1292 = vmatprep.subr.mxu0 %v450
    %1293 = vmatpush1.msra.mxu0 %v449
    %1294 = vmatprep.subr.mxu0 %v458
    %1295 = vmatpush1.msra.mxu0 %v457
    %1296 = vmatprep.subr.mxu0 %v466
    %1297 = vmatpush1.msra.mxu0 %v465
    %1298 = vmatprep.subr.mxu0 %v474
    %1299 = vmatpush1.msra.mxu0 %v473
    %1300 = vmatprep.subr.mxu0 %v482
    %1301 = vmatpush1.msra.mxu0 %v481
    %1302 = vmatprep.subr.mxu0 %v490
    %1303 = vmatpush1.msra.mxu0 %v489
    %1304 = vmatprep.subr.mxu0 %v498
    %1305 = vmatpush1.msra.mxu0 %v497
    %1306 = vmatprep.subr.mxu0 %v506
    %1307 = vmatpush1.msra.mxu0 %v505
    %1308 = vmatprep.subr.mxu0 %v514
    %1309 = vmatpush1.msra.mxu0 %v513
    %1310 = vmatprep.subr.mxu0 %v522
    %1311 = vmatpush1.msra.mxu0 %v521
    %1312 = vmatprep.subr.mxu0 %v530
    %1313 = vmatpush1.msra.mxu0 %v529
    %1314 = vmatprep.subr.mxu0 %v538
    %1315 = vmatpush1.msra.mxu0 %v537
    %1316 = vmatprep.subr.mxu0 %v546
    %1317 = vmatpush1.msra.mxu0 %v545
    %1318 = vmatprep.subr.mxu0 %v554
    %1319 = vmatpush1.msra.mxu0 %v553
    %1320 = vmatprep.subr.mxu0 %v562
    %1321 = vmatpush1.msra.mxu0 %v561
    %1322 = vmatprep.mubr.f32.mxu0 %v710
    %1323 = vmatmul.mubr.f32.gmra.mrb[0].mxu0 %v706
    %v1324 = vpop.f32.mrb[0].mxu0
    %v1325 = vadd.f32 %v1254, %v1324
    %v1326 = vpop.f32.mrb[0].mxu0
    %v1327 = vadd.f32 %v1256, %v1326
    %1328 = vdwg.mxu0
    %1329 = vmatprep.subr.mxu0 %v570
    %1330 = vmatpush1.msra.mxu0 %v569
    %1331 = vmatprep.subr.mxu0 %v578
    %1332 = vmatpush1.msra.mxu0 %v577
    %1333 = vmatprep.subr.mxu0 %v586
    %1334 = vmatpush1.msra.mxu0 %v585
    %1335 = vmatprep.subr.mxu0 %v594
    %1336 = vmatpush1.msra.mxu0 %v593
    %1337 = vmatprep.subr.mxu0 %v602
    %1338 = vmatpush1.msra.mxu0 %v601
    %1339 = vmatprep.subr.mxu0 %v610
    %1340 = vmatpush1.msra.mxu0 %v609
    %1341 = vmatprep.subr.mxu0 %v618
    %1342 = vmatpush1.msra.mxu0 %v617
    %1343 = vmatprep.subr.mxu0 %v626
    %1344 = vmatpush1.msra.mxu0 %v625
    %1345 = vmatprep.subr.mxu0 %v634
    %1346 = vmatpush1.msra.mxu0 %v633
    %1347 = vmatprep.subr.mxu0 %v642
    %1348 = vmatpush1.msra.mxu0 %v641
    %1349 = vmatprep.subr.mxu0 %v650
    %1350 = vmatpush1.msra.mxu0 %v649
    %1351 = vmatprep.subr.mxu0 %v658
    %1352 = vmatpush1.msra.mxu0 %v657
    %1353 = vmatprep.subr.mxu0 %v666
    %1354 = vmatpush1.msra.mxu0 %v665
    %1355 = vmatprep.subr.mxu0 %v674
    %1356 = vmatpush1.msra.mxu0 %v673
    %1357 = vmatprep.subr.mxu0 %v682
    %1358 = vmatpush1.msra.mxu0 %v681
    %1359 = vmatprep.subr.mxu0 %v690
    %1360 = vmatpush1.msra.mxu0 %v689
    %1361 = vmatprep.subr.mxu0 0.0
    %1362 = vmatpush1.msra.mxu0 0.0
    %1363 = vmatprep.subr.mxu0 0.0
    %1364 = vmatpush1.msra.mxu0 0.0
    %1365 = vmatprep.subr.mxu0 0.0
    %1366 = vmatpush1.msra.mxu0 0.0
    %1367 = vmatprep.subr.mxu0 0.0
    %1368 = vmatpush1.msra.mxu0 0.0
    %1369 = vmatprep.subr.mxu0 0.0
    %1370 = vmatpush1.msra.mxu0 0.0
    %1371 = vmatprep.subr.mxu0 0.0
    %1372 = vmatpush1.msra.mxu0 0.0
    %1373 = vmatprep.subr.mxu0 0.0
    %1374 = vmatpush1.msra.mxu0 0.0
    %1375 = vmatprep.subr.mxu0 0.0
    %1376 = vmatpush1.msra.mxu0 0.0
    %1377 = vmatprep.subr.mxu0 0.0
    %1378 = vmatpush1.msra.mxu0 0.0
    %1379 = vmatprep.subr.mxu0 0.0
    %1380 = vmatpush1.msra.mxu0 0.0
    %1381 = vmatprep.subr.mxu0 0.0
    %1382 = vmatpush1.msra.mxu0 0.0
    %1383 = vmatprep.subr.mxu0 0.0
    %1384 = vmatpush1.msra.mxu0 0.0
    %1385 = vmatprep.subr.mxu0 0.0
    %1386 = vmatpush1.msra.mxu0 0.0
    %1387 = vmatprep.subr.mxu0 0.0
    %1388 = vmatpush1.msra.mxu0 0.0
    %1389 = vmatprep.subr.mxu0 0.0
    %1390 = vmatpush1.msra.mxu0 0.0
    %1391 = vmatprep.subr.mxu0 0.0
    %1392 = vmatpush1.msra.mxu0 0.0
    %1393 = vmatprep.mubr.f32.mxu0 0.0
    %1394 = vmatmul.mubr.f32.gmra.mrb[0].mxu0 %v714
    %v1395 = vpop.f32.mrb[0].mxu0
    %v1396 = vadd.f32 %v1325, %v1395
    %v1397 = vpop.f32.mrb[0].mxu0
    %v1398 = vadd.f32 %v1327, %v1397
    %1399 = vdwg.mxu0
    %1400 = vmatprep.subr.mxu0 %v60
    %1401 = vmatpush1.msra.mxu0 %v59
    %1402 = vmatprep.subr.mxu0 %v68
    %1403 = vmatpush1.msra.mxu0 %v67
    %1404 = vmatprep.subr.mxu0 %v76
    %1405 = vmatpush1.msra.mxu0 %v75
    %1406 = vmatprep.subr.mxu0 %v84
    %1407 = vmatpush1.msra.mxu0 %v83
    %1408 = vmatprep.subr.mxu0 %v92
    %1409 = vmatpush1.msra.mxu0 %v91
    %1410 = vmatprep.subr.mxu0 %v100
    %1411 = vmatpush1.msra.mxu0 %v99
    %1412 = vmatprep.subr.mxu0 %v108
    %1413 = vmatpush1.msra.mxu0 %v107
    %1414 = vmatprep.subr.mxu0 %v116
    %1415 = vmatpush1.msra.mxu0 %v115
    %1416 = vmatprep.subr.mxu0 %v124
    %1417 = vmatpush1.msra.mxu0 %v123
    %1418 = vmatprep.subr.mxu0 %v132
    %1419 = vmatpush1.msra.mxu0 %v131
    %1420 = vmatprep.subr.mxu0 %v140
    %1421 = vmatpush1.msra.mxu0 %v139
    %1422 = vmatprep.subr.mxu0 %v148
    %1423 = vmatpush1.msra.mxu0 %v147
    %1424 = vmatprep.subr.mxu0 %v156
    %1425 = vmatpush1.msra.mxu0 %v155
    %1426 = vmatprep.subr.mxu0 %v164
    %1427 = vmatpush1.msra.mxu0 %v163
    %1428 = vmatprep.subr.mxu0 %v172
    %1429 = vmatpush1.msra.mxu0 %v171
    %1430 = vmatprep.subr.mxu0 %v180
    %1431 = vmatpush1.msra.mxu0 %v179
    %1432 = vmatprep.subr.mxu0 %v188
    %1433 = vmatpush1.msra.mxu0 %v187
    %1434 = vmatprep.subr.mxu0 %v196
    %1435 = vmatpush1.msra.mxu0 %v195
    %1436 = vmatprep.subr.mxu0 %v204
    %1437 = vmatpush1.msra.mxu0 %v203
    %1438 = vmatprep.subr.mxu0 %v212
    %1439 = vmatpush1.msra.mxu0 %v211
    %1440 = vmatprep.subr.mxu0 %v220
    %1441 = vmatpush1.msra.mxu0 %v219
    %1442 = vmatprep.subr.mxu0 %v228
    %1443 = vmatpush1.msra.mxu0 %v227
    %1444 = vmatprep.subr.mxu0 %v236
    %1445 = vmatpush1.msra.mxu0 %v235
    %1446 = vmatprep.subr.mxu0 %v244
    %1447 = vmatpush1.msra.mxu0 %v243
    %1448 = vmatprep.subr.mxu0 %v252
    %1449 = vmatpush1.msra.mxu0 %v251
    %1450 = vmatprep.subr.mxu0 %v260
    %1451 = vmatpush1.msra.mxu0 %v259
    %1452 = vmatprep.subr.mxu0 %v268
    %1453 = vmatpush1.msra.mxu0 %v267
    %1454 = vmatprep.subr.mxu0 %v276
    %1455 = vmatpush1.msra.mxu0 %v275
    %1456 = vmatprep.subr.mxu0 %v284
    %1457 = vmatpush1.msra.mxu0 %v283
    %1458 = vmatprep.subr.mxu0 %v292
    %1459 = vmatpush1.msra.mxu0 %v291
    %1460 = vmatprep.subr.mxu0 %v300
    %1461 = vmatpush1.msra.mxu0 %v299
    %1462 = vmatprep.subr.mxu0 %v308
    %1463 = vmatpush1.msra.mxu0 %v307
    %1464 = vmatprep.mubr.f32.mxu0 %v702
    %1465 = vmatmul.mubr.f32.gmra.mrb[0].mxu0 %v698
    %v1466 = vpop.f32.mrb[0].mxu0
    %v1467 = vadd.f32 %v748, %v1466
    %v1468 = vpop.f32.mrb[0].mxu0
    %v1469 = vadd.f32 %v752, %v1468
    %1470 = vdwg.mxu0
    %1471 = vmatprep.subr.mxu0 %v316
    %1472 = vmatpush1.msra.mxu0 %v315
    %1473 = vmatprep.subr.mxu0 %v324
    %1474 = vmatpush1.msra.mxu0 %v323
    %1475 = vmatprep.subr.mxu0 %v332
    %1476 = vmatpush1.msra.mxu0 %v331
    %1477 = vmatprep.subr.mxu0 %v340
    %1478 = vmatpush1.msra.mxu0 %v339
    %1479 = vmatprep.subr.mxu0 %v348
    %1480 = vmatpush1.msra.mxu0 %v347
    %1481 = vmatprep.subr.mxu0 %v356
    %1482 = vmatpush1.msra.mxu0 %v355
    %1483 = vmatprep.subr.mxu0 %v364
    %1484 = vmatpush1.msra.mxu0 %v363
    %1485 = vmatprep.subr.mxu0 %v372
    %1486 = vmatpush1.msra.mxu0 %v371
    %1487 = vmatprep.subr.mxu0 %v380
    %1488 = vmatpush1.msra.mxu0 %v379
    %1489 = vmatprep.subr.mxu0 %v388
    %1490 = vmatpush1.msra.mxu0 %v387
    %1491 = vmatprep.subr.mxu0 %v396
    %1492 = vmatpush1.msra.mxu0 %v395
    %1493 = vmatprep.subr.mxu0 %v404
    %1494 = vmatpush1.msra.mxu0 %v403
    %1495 = vmatprep.subr.mxu0 %v412
    %1496 = vmatpush1.msra.mxu0 %v411
    %1497 = vmatprep.subr.mxu0 %v420
    %1498 = vmatpush1.msra.mxu0 %v419
    %1499 = vmatprep.subr.mxu0 %v428
    %1500 = vmatpush1.msra.mxu0 %v427
    %1501 = vmatprep.subr.mxu0 %v436
    %1502 = vmatpush1.msra.mxu0 %v435
    %1503 = vmatprep.subr.mxu0 %v444
    %1504 = vmatpush1.msra.mxu0 %v443
    %1505 = vmatprep.subr.mxu0 %v452
    %1506 = vmatpush1.msra.mxu0 %v451
    %1507 = vmatprep.subr.mxu0 %v460
    %1508 = vmatpush1.msra.mxu0 %v459
    %1509 = vmatprep.subr.mxu0 %v468
    %1510 = vmatpush1.msra.mxu0 %v467
    %1511 = vmatprep.subr.mxu0 %v476
    %1512 = vmatpush1.msra.mxu0 %v475
    %1513 = vmatprep.subr.mxu0 %v484
    %1514 = vmatpush1.msra.mxu0 %v483
    %1515 = vmatprep.subr.mxu0 %v492
    %1516 = vmatpush1.msra.mxu0 %v491
    %1517 = vmatprep.subr.mxu0 %v500
    %1518 = vmatpush1.msra.mxu0 %v499
    %1519 = vmatprep.subr.mxu0 %v508
    %1520 = vmatpush1.msra.mxu0 %v507
    %1521 = vmatprep.subr.mxu0 %v516
    %1522 = vmatpush1.msra.mxu0 %v515
    %1523 = vmatprep.subr.mxu0 %v524
    %1524 = vmatpush1.msra.mxu0 %v523
    %1525 = vmatprep.subr.mxu0 %v532
    %1526 = vmatpush1.msra.mxu0 %v531
    %1527 = vmatprep.subr.mxu0 %v540
    %1528 = vmatpush1.msra.mxu0 %v539
    %1529 = vmatprep.subr.mxu0 %v548
    %1530 = vmatpush1.msra.mxu0 %v547
    %1531 = vmatprep.subr.mxu0 %v556
    %1532 = vmatpush1.msra.mxu0 %v555
    %1533 = vmatprep.subr.mxu0 %v564
    %1534 = vmatpush1.msra.mxu0 %v563
    %1535 = vmatprep.mubr.f32.mxu0 %v710
    %1536 = vmatmul.mubr.f32.gmra.mrb[0].mxu0 %v706
    %v1537 = vpop.f32.mrb[0].mxu0
    %v1538 = vadd.f32 %v1467, %v1537
    %v1539 = vpop.f32.mrb[0].mxu0
    %v1540 = vadd.f32 %v1469, %v1539
    %1541 = vdwg.mxu0
    %1542 = vmatprep.subr.mxu0 %v572
    %1543 = vmatpush1.msra.mxu0 %v571
    %1544 = vmatprep.subr.mxu0 %v580
    %1545 = vmatpush1.msra.mxu0 %v579
    %1546 = vmatprep.subr.mxu0 %v588
    %1547 = vmatpush1.msra.mxu0 %v587
    %1548 = vmatprep.subr.mxu0 %v596
    %1549 = vmatpush1.msra.mxu0 %v595
    %1550 = vmatprep.subr.mxu0 %v604
    %1551 = vmatpush1.msra.mxu0 %v603
    %1552 = vmatprep.subr.mxu0 %v612
    %1553 = vmatpush1.msra.mxu0 %v611
    %1554 = vmatprep.subr.mxu0 %v620
    %1555 = vmatpush1.msra.mxu0 %v619
    %1556 = vmatprep.subr.mxu0 %v628
    %1557 = vmatpush1.msra.mxu0 %v627
    %1558 = vmatprep.subr.mxu0 %v636
    %1559 = vmatpush1.msra.mxu0 %v635
    %1560 = vmatprep.subr.mxu0 %v644
    %1561 = vmatpush1.msra.mxu0 %v643
    %1562 = vmatprep.subr.mxu0 %v652
    %1563 = vmatpush1.msra.mxu0 %v651
    %1564 = vmatprep.subr.mxu0 %v660
    %1565 = vmatpush1.msra.mxu0 %v659
    %1566 = vmatprep.subr.mxu0 %v668
    %1567 = vmatpush1.msra.mxu0 %v667
    %1568 = vmatprep.subr.mxu0 %v676
    %1569 = vmatpush1.msra.mxu0 %v675
    %1570 = vmatprep.subr.mxu0 %v684
    %1571 = vmatpush1.msra.mxu0 %v683
    %1572 = vmatprep.subr.mxu0 %v692
    %1573 = vmatpush1.msra.mxu0 %v691
    %1574 = vmatprep.subr.mxu0 0.0
    %1575 = vmatpush1.msra.mxu0 0.0
    %1576 = vmatprep.subr.mxu0 0.0
    %1577 = vmatpush1.msra.mxu0 0.0
    %1578 = vmatprep.subr.mxu0 0.0
    %1579 = vmatpush1.msra.mxu0 0.0
    %1580 = vmatprep.subr.mxu0 0.0
    %1581 = vmatpush1.msra.mxu0 0.0
    %1582 = vmatprep.subr.mxu0 0.0
    %1583 = vmatpush1.msra.mxu0 0.0
    %1584 = vmatprep.subr.mxu0 0.0
    %1585 = vmatpush1.msra.mxu0 0.0
    %1586 = vmatprep.subr.mxu0 0.0
    %1587 = vmatpush1.msra.mxu0 0.0
    %1588 = vmatprep.subr.mxu0 0.0
    %1589 = vmatpush1.msra.mxu0 0.0
    %1590 = vmatprep.subr.mxu0 0.0
    %1591 = vmatpush1.msra.mxu0 0.0
    %1592 = vmatprep.subr.mxu0 0.0
    %1593 = vmatpush1.msra.mxu0 0.0
    %1594 = vmatprep.subr.mxu0 0.0
    %1595 = vmatpush1.msra.mxu0 0.0
    %1596 = vmatprep.subr.mxu0 0.0
    %1597 = vmatpush1.msra.mxu0 0.0
    %1598 = vmatprep.subr.mxu0 0.0
    %1599 = vmatpush1.msra.mxu0 0.0
    %1600 = vmatprep.subr.mxu0 0.0
    %1601 = vmatpush1.msra.mxu0 0.0
    %1602 = vmatprep.subr.mxu0 0.0
    %1603 = vmatpush1.msra.mxu0 0.0
    %1604 = vmatprep.subr.mxu0 0.0
    %1605 = vmatpush1.msra.mxu0 0.0
    %1606 = vmatprep.mubr.f32.mxu0 0.0
    %1607 = vmatmul.mubr.f32.gmra.mrb[0].mxu0 %v714
    %v1608 = vpop.f32.mrb[0].mxu0
    %v1609 = vadd.f32 %v1538, %v1608
    %v1610 = vpop.f32.mrb[0].mxu0
    %v1611 = vadd.f32 %v1540, %v1610
    %1612 = vdwg.mxu0
    %v1621 = vcombine.low %v970, %v972
    %v1622 = vcombine.low %v1183, %v1185
    %v1623 = vcombine.low %v1396, %v1398
    %v1624 = vcombine.low %v1609, %v1611
    %v1626 = vunpack.c.l.s4 1966171168
    %v1627 = vunpack.c.0.s8 %v1626
    %v1628 = vlaneseq
    %v1629 = vshrl.u32 %v1628, 7
    %v1630 = vsub.s32 %v1627, %v1629
    %v1631 = vrot.slane %v1621, %v1630
    %v1633 = vunpack.c.l.s4 1966171168
    %v1634 = vunpack.c.0.s8 %v1633
    %v1635 = vlaneseq
    %v1636 = vshrl.u32 %v1635, 7
    %v1637 = vsub.s32 %v1634, %v1636
    %v1638 = vrot.slane %v1622, %v1637
    %v1640 = vunpack.c.l.s4 1966171168
    %v1641 = vunpack.c.0.s8 %v1640
    %v1642 = vlaneseq
    %v1643 = vshrl.u32 %v1642, 7
    %v1644 = vsub.s32 %v1641, %v1643
    %v1645 = vrot.slane %v1623, %v1644
    %v1647 = vunpack.c.l.s4 1966171168
    %v1648 = vunpack.c.0.s8 %v1647
    %v1649 = vlaneseq
    %v1650 = vshrl.u32 %v1649, 7
    %v1651 = vsub.s32 %v1648, %v1650
    %v1652 = vrot.slane %v1624, %v1651
    %v1653 = vcombine.low %v1631, %v1638
    %v1654 = vcombine.low %v1645, %v1652
    %v1656 = vunpack.c.l.s4 1966171168
    %v1657 = vunpack.c.0.s8 %v1656
    %v1658 = vlaneseq
    %v1659 = vshrl.u32 %v1658, 7
    %v1660 = vsub.s32 %v1657, %v1659
    %v1661 = vrot.slane %v1653, %v1660
    %v1663 = vunpack.c.l.s4 1966171168
    %v1664 = vunpack.c.0.s8 %v1663
    %v1665 = vlaneseq
    %v1666 = vshrl.u32 %v1665, 7
    %v1667 = vsub.s32 %v1664, %v1666
    %v1668 = vrot.slane %v1654, %v1667
    %v1669 = vcombine.low %v1661, %v1668
    %1671 = vst [vmem:[#allocation8] sm:$0xff] %v1669
    // Predicated region
    $region26: #{tpu_custom_call.1} parent=1 // pred_check
      _
    $region27: #{tpu_custom_call.1} parent=1 // pred_check_branch
      %1673 = sbr.rel (0) target = $region29
    $region28: #{tpu_custom_call.1} parent=1 // pred_region
      %s1675 = ssub.s32 128, 128
      %1676 = vsyncadd [#allocation4], %s1675
      %s1678 = sshll.u32 [#allocation8], 4
      %s1679 = int_to_ptr.vmem [resolvable:$true] %s1678
      %1681 = dma.vmem_to_hbm [thread:$0]  %s1679, 128, %s3, [#allocation4]
    $region29: #{tpu_custom_call.1} parent=1 // pred_fallthru
      _
    // Predicated region
    $region30: #{tpu_custom_call.1} parent=1 // pred_check
      _
    $region31: #{tpu_custom_call.1} parent=1 // pred_check_branch
      %1683 = sbr.rel (0) target = $region33
    $region32: #{tpu_custom_call.1} parent=1 // pred_region
      %1684 = dma.done [#allocation4], 128
    $region33: #{tpu_custom_call.1} parent=1 // pred_fallthru
      _
    %1685 = vsyncpa [#allocation3], 1
    %1686 = vsyncpa [#allocation6], 1
    %1687 = vsyncpa [#allocation4], 1

</llo_original>
